<compile_context>
chip_gen: v7x
topology: tpu7x:2x2x1
jax: 0.10.0
libtpu: 0.0.40
codegen_flags: <defaults>
</compile_context>

<pallas_src>
import math
from functools import partial

import jax
import jax.numpy as jnp
from jax.experimental import pallas as pl
from jax.experimental.pallas import tpu as pltpu


def mha_kernel(q_ref, k_ref, v_ref,
               wq_t_ref, wk_t_ref, wv_t_ref, wfc_t_ref,
               gamma_ref, beta_ref,
               *out_refs,
               n_head, d_k, d_v, eps, return_attn):
    if return_attn:
        out_ref, attn_ref = out_refs
    else:
        (out_ref,) = out_refs

    cdt = q_ref.dtype          # MXU operand dtype (bf16 stays bf16, f32 stays f32)

    q = q_ref[0]               # (Lq, d_model)
    k = k_ref[0]               # (Lk, d_model)
    v = v_ref[0]               # (Lk, d_model)
    Lq = q.shape[0]
    Lk = k.shape[0]

    # Full-width projections. Weights arrive pre-transposed as (in, out) and
    # 1/sqrt(d_k) is already folded into wq_t, so no .T and no scale here.
    qp = jnp.dot(q, wq_t_ref[...], preferred_element_type=jnp.float32)   # (Lq, H*d_k)
    kp = jnp.dot(k, wk_t_ref[...], preferred_element_type=jnp.float32)   # (Lk, H*d_k)
    vp = jnp.dot(v, wv_t_ref[...], preferred_element_type=jnp.float32)   # (Lk, H*d_v)

    qh = qp.astype(cdt).reshape(Lq, n_head, d_k)
    kh = kp.astype(cdt).reshape(Lk, n_head, d_k)
    vh = vp.astype(cdt).reshape(Lk, n_head, d_v)

    # Batched (per-head) attention: head axis is a dot_general batch dim.
    logits = jnp.einsum("qhd,khd->hqk", qh, kh,
                        preferred_element_type=jnp.float32)              # (H, Lq, Lk)

    m = jnp.max(logits, axis=-1, keepdims=True)
    e = jnp.exp(logits - m)
    denom = jnp.sum(e, axis=-1, keepdims=True)
    inv = pl.reciprocal(denom, approx=True)                              # EUP, ~free
    probs = e * inv                                                      # (H, Lq, Lk) f32

    if return_attn:
        attn_ref[0] = probs.astype(attn_ref.dtype)

    # attn @ V, result requested directly in (q, h, d) order -> lane-dense concat.
    o = jnp.einsum("hqk,khd->qhd", probs.astype(cdt), vh,
                   preferred_element_type=jnp.float32)                   # (Lq, H, d_v)
    concat = o.reshape(Lq, n_head * d_v)

    fc_out = jnp.dot(concat.astype(cdt), wfc_t_ref[...],
                     preferred_element_type=jnp.float32)                 # (Lq, d_model)

    # Residual add + LayerNorm (biased variance, eps=1e-6) in f32.
    x = fc_out + q.astype(jnp.float32)
    mean = jnp.mean(x, axis=-1, keepdims=True)
    xc = x - mean
    var = jnp.mean(xc * xc, axis=-1, keepdims=True)
    y = xc * jax.lax.rsqrt(var + eps)                                    # EUP rsqrt
    y = y * gamma_ref[...].astype(jnp.float32) + beta_ref[...].astype(jnp.float32)

    out_ref[0] = y.astype(out_ref.dtype)


def prepare_params(params, *, d_k):
    """One-time host-side prep: transpose weights to (in, out) and fold the
    1/sqrt(d_k) attention scale into the query weights."""
    scale = 1.0 / math.sqrt(float(d_k))
    return {
        "wq_t": jnp.asarray(params["w_qs"]).T * scale,   # (d_model, H*d_k)
        "wk_t": jnp.asarray(params["w_ks"]).T,           # (d_model, H*d_k)
        "wv_t": jnp.asarray(params["w_vs"]).T,           # (d_model, H*d_v)
        "wfc_t": jnp.asarray(params["fc"]).T,            # (H*d_v, d_model)
        "gamma": jnp.asarray(params["ln_weight"]).reshape(1, -1),
        "beta": jnp.asarray(params["ln_bias"]).reshape(1, -1),
    }


def multi_head_attention(q, k, v, prepared, *, n_head, d_k, d_v,
                         eps=1e-6, return_attn=True):
    """q, k, v: (B, L, d_model).
    Returns (out (B, Lq, d_model), attn (B, H, Lq, Lk) or None)."""
    B, Lq, d_model = q.shape
    Lk = k.shape[1]

    wq_t, wk_t, wv_t, wfc_t = (prepared["wq_t"], prepared["wk_t"],
                               prepared["wv_t"], prepared["wfc_t"])
    gamma, beta = prepared["gamma"], prepared["beta"]

    kernel = partial(mha_kernel, n_head=n_head, d_k=d_k, d_v=d_v,
                     eps=eps, return_attn=return_attn)

    def full(shape):
        return pl.BlockSpec(shape, lambda b, _s=shape: (0,) * len(_s))

    out_shapes = [jax.ShapeDtypeStruct((B, Lq, d_model), q.dtype)]
    out_specs = [pl.BlockSpec((1, Lq, d_model), lambda b: (b, 0, 0))]
    if return_attn:
        out_shapes.append(jax.ShapeDtypeStruct((B, n_head, Lq, Lk), jnp.float32))
        out_specs.append(pl.BlockSpec((1, n_head, Lq, Lk), lambda b: (b, 0, 0, 0)))

    results = pl.pallas_call(
        kernel,
        out_shape=tuple(out_shapes),
        grid_spec=pltpu.PrefetchScalarGridSpec(
            num_scalar_prefetch=0,
            grid=(B,),
            in_specs=[
                pl.BlockSpec((1, Lq, d_model), lambda b: (b, 0, 0)),
                pl.BlockSpec((1, Lk, d_model), lambda b: (b, 0, 0)),
                pl.BlockSpec((1, Lk, d_model), lambda b: (b, 0, 0)),
                full(wq_t.shape),
                full(wk_t.shape),
                full(wv_t.shape),
                full(wfc_t.shape),
                full(gamma.shape),
                full(beta.shape),
            ],
            out_specs=out_specs,
        ),
        compiler_params=pltpu.CompilerParams(
            dimension_semantics=("parallel",)),
    )(q, k, v, wq_t, wk_t, wv_t, wfc_t, gamma, beta)

    if return_attn:
        out, attn = results
        return out, attn
    return results[0], None


def reference_mha(q, k, v, params, *, n_head, d_k, d_v, eps=1e-6):
    """Pure-JAX reference mirroring the PyTorch forward (dropout = identity)."""
    B, Lq, d_model = q.shape
    Lk = k.shape[1]
    residual = q
    qp = (q @ params["w_qs"].T).reshape(B, Lq, n_head, d_k).transpose(0, 2, 1, 3)
    kp = (k @ params["w_ks"].T).reshape(B, Lk, n_head, d_k).transpose(0, 2, 1, 3)
    vp = (v @ params["w_vs"].T).reshape(B, Lk, n_head, d_v).transpose(0, 2, 1, 3)
    attn = jnp.einsum("bhqd,bhkd->bhqk", qp / math.sqrt(d_k), kp)
    attn = jax.nn.softmax(attn, axis=-1)
    o = jnp.einsum("bhqk,bhkd->bhqd", attn, vp)
    o = o.transpose(0, 2, 1, 3).reshape(B, Lq, n_head * d_v)
    o = o @ params["fc"].T
    x = o + residual
    mean = jnp.mean(x, axis=-1, keepdims=True)
    var = jnp.mean((x - mean) ** 2, axis=-1, keepdims=True)
    y = (x - mean) / jnp.sqrt(var + eps)
    y = y * params["ln_weight"] + params["ln_bias"]
    return y, attn


if __name__ == "__main__":
    # Small synthetic config.
    B, L, d_model = 2, 8, 32
    n_head, d_k, d_v = 4, 8, 8

    key = jax.random.PRNGKey(0)
    ks = jax.random.split(key, 9)

    def init_linear(k_, out_f, in_f):
        bound = 1.0 / math.sqrt(in_f)
        return jax.random.uniform(k_, (out_f, in_f), jnp.float32, -bound, bound)

    params = {
        "w_qs": init_linear(ks[0], n_head * d_k, d_model),
        "w_ks": init_linear(ks[1], n_head * d_k, d_model),
        "w_vs": init_linear(ks[2], n_head * d_v, d_model),
        "fc":   init_linear(ks[3], d_model, n_head * d_v),
        "ln_weight": jax.random.uniform(ks[7], (d_model,), jnp.float32, 0.5, 1.5),
        "ln_bias":   jax.random.uniform(ks[8], (d_model,), jnp.float32, -0.5, 0.5),
    }

    q = jax.random.normal(ks[4], (B, L, d_model), jnp.float32)
    k = jax.random.normal(ks[5], (B, L, d_model), jnp.float32)
    v = jax.random.normal(ks[6], (B, L, d_model), jnp.float32)

    prepared = prepare_params(params, d_k=d_k)

    out, attn = multi_head_attention(q, k, v, prepared,
                                     n_head=n_head, d_k=d_k, d_v=d_v,
                                     return_attn=True)
    out = jax.block_until_ready(out)
    attn = jax.block_until_ready(attn)

    ref_out, ref_attn = reference_mha(q, k, v, params,
                                      n_head=n_head, d_k=d_k, d_v=d_v)

    assert out.shape == (B, L, d_model)
    assert attn.shape == (B, n_head, L, L)
    # Tolerances slightly loosened vs. exact-divide version because softmax
    # normalization uses the EUP approximate reciprocal.
    assert jnp.allclose(attn, ref_attn, atol=2e-3, rtol=2e-3), (
        float(jnp.max(jnp.abs(attn - ref_attn))))
    assert jnp.allclose(out, ref_out, atol=5e-3, rtol=5e-3), (
        float(jnp.max(jnp.abs(out - ref_out))))

    print("KERNEL_OK")
</pallas_src>

<mosaic_0001>
module attributes {stable_mosaic.version = 11 : i64} {
  func.func @mha_kernel(%arg0: i32, %arg1: memref<1x8x32xf32, #tpu.memory_space<vmem>>, %arg2: memref<1x8x32xf32, #tpu.memory_space<vmem>>, %arg3: memref<1x8x32xf32, #tpu.memory_space<vmem>>, %arg4: memref<32x32xf32, #tpu.memory_space<vmem>>, %arg5: memref<32x32xf32, #tpu.memory_space<vmem>>, %arg6: memref<32x32xf32, #tpu.memory_space<vmem>>, %arg7: memref<32x32xf32, #tpu.memory_space<vmem>>, %arg8: memref<1x32xf32, #tpu.memory_space<vmem>>, %arg9: memref<1x32xf32, #tpu.memory_space<vmem>>, %arg10: memref<1x8x32xf32, #tpu.memory_space<vmem>>, %arg11: memref<1x4x8x8xf32, #tpu.memory_space<vmem>>) attributes {dimension_semantics = [#tpu.dimension_semantics<parallel>], iteration_bounds = array<i64: 2>, scalar_prefetch = 0 : i64, scratch_operands = 0 : i64, tpu.core_type = #tpu.core_type<tc>, window_params = [{transform_indices = @transform_0, window_bounds = array<i64: 1, 8, 32>}, {transform_indices = @transform_1, window_bounds = array<i64: 1, 8, 32>}, {transform_indices = @transform_2, window_bounds = array<i64: 1, 8, 32>}, {pipeline_mode = #tpu.pipeline_mode<synchronous>, transform_indices = @transform_3, window_bounds = array<i64: 32, 32>}, {pipeline_mode = #tpu.pipeline_mode<synchronous>, transform_indices = @transform_4, window_bounds = array<i64: 32, 32>}, {pipeline_mode = #tpu.pipeline_mode<synchronous>, transform_indices = @transform_5, window_bounds = array<i64: 32, 32>}, {pipeline_mode = #tpu.pipeline_mode<synchronous>, transform_indices = @transform_6, window_bounds = array<i64: 32, 32>}, {pipeline_mode = #tpu.pipeline_mode<synchronous>, transform_indices = @transform_7, window_bounds = array<i64: 1, 32>}, {pipeline_mode = #tpu.pipeline_mode<synchronous>, transform_indices = @transform_8, window_bounds = array<i64: 1, 32>}, {transform_indices = @transform_9, window_bounds = array<i64: 1, 8, 32>}, {transform_indices = @transform_10, window_bounds = array<i64: 1, 4, 8, 8>}]} {
    %c0 = arith.constant 0 : index
    %c0_0 = arith.constant 0 : index
    %c0_1 = arith.constant 0 : index
    %0 = vector.load %arg1[%c0, %c0_0, %c0_1] : memref<1x8x32xf32, #tpu.memory_space<vmem>>, vector<1x8x32xf32>
    %1 = vector.shape_cast %0 : vector<1x8x32xf32> to vector<8x32xf32>
    %c0_2 = arith.constant 0 : index
    %c0_3 = arith.constant 0 : index
    %c0_4 = arith.constant 0 : index
    %2 = vector.load %arg2[%c0_2, %c0_3, %c0_4] : memref<1x8x32xf32, #tpu.memory_space<vmem>>, vector<1x8x32xf32>
    %3 = vector.shape_cast %2 : vector<1x8x32xf32> to vector<8x32xf32>
    %c0_5 = arith.constant 0 : index
    %c0_6 = arith.constant 0 : index
    %c0_7 = arith.constant 0 : index
    %4 = vector.load %arg3[%c0_5, %c0_6, %c0_7] : memref<1x8x32xf32, #tpu.memory_space<vmem>>, vector<1x8x32xf32>
    %5 = vector.shape_cast %4 : vector<1x8x32xf32> to vector<8x32xf32>
    %c0_8 = arith.constant 0 : index
    %c0_9 = arith.constant 0 : index
    %6 = vector.load %arg4[%c0_8, %c0_9] : memref<32x32xf32, #tpu.memory_space<vmem>>, vector<32x32xf32>
    %cst = arith.constant dense<0.000000e+00> : vector<8x32xf32>
    %7 = tpu.matmul %1, %6, %cst {dimension_numbers = #tpu.dot_dimension_numbers<[1], [0], [0], [1], [0, 0, 1, 1], [], []>} : vector<8x32xf32>, vector<32x32xf32>, vector<8x32xf32> -> vector<8x32xf32>
    %c0_10 = arith.constant 0 : index
    %c0_11 = arith.constant 0 : index
    %8 = vector.load %arg5[%c0_10, %c0_11] : memref<32x32xf32, #tpu.memory_space<vmem>>, vector<32x32xf32>
    %cst_12 = arith.constant dense<0.000000e+00> : vector<8x32xf32>
    %9 = tpu.matmul %3, %8, %cst_12 {dimension_numbers = #tpu.dot_dimension_numbers<[1], [0], [0], [1], [0, 0, 1, 1], [], []>} : vector<8x32xf32>, vector<32x32xf32>, vector<8x32xf32> -> vector<8x32xf32>
    %c0_13 = arith.constant 0 : index
    %c0_14 = arith.constant 0 : index
    %10 = vector.load %arg6[%c0_13, %c0_14] : memref<32x32xf32, #tpu.memory_space<vmem>>, vector<32x32xf32>
    %cst_15 = arith.constant dense<0.000000e+00> : vector<8x32xf32>
    %11 = tpu.matmul %5, %10, %cst_15 {dimension_numbers = #tpu.dot_dimension_numbers<[1], [0], [0], [1], [0, 0, 1, 1], [], []>} : vector<8x32xf32>, vector<32x32xf32>, vector<8x32xf32> -> vector<8x32xf32>
    %12 = vector.shape_cast %7 : vector<8x32xf32> to vector<8x4x8xf32>
    %13 = vector.shape_cast %9 : vector<8x32xf32> to vector<8x4x8xf32>
    %14 = vector.shape_cast %11 : vector<8x32xf32> to vector<8x4x8xf32>
    "tpu.trace_start"() <{level = 10 : i32, message = "qhd,khd->hqk"}> : () -> ()
    %cst_16 = arith.constant dense<0.000000e+00> : vector<4x8x8xf32>
    %15 = tpu.matmul %12, %13, %cst_16 {dimension_numbers = #tpu.dot_dimension_numbers<[2], [2], [0], [0], [0, 1, 0, 0, 1, 0], [1], [1]>} : vector<8x4x8xf32>, vector<8x4x8xf32>, vector<4x8x8xf32> -> vector<4x8x8xf32>
    "tpu.trace_stop"() : () -> ()
    %cst_17 = arith.constant dense<0xFF800000> : vector<4x8xf32>
    %16 = vector.multi_reduction <maximumf>, %15, %cst_17 [2] : vector<4x8x8xf32> to vector<4x8xf32>
    %17 = vector.shape_cast %16 : vector<4x8xf32> to vector<4x8x1xf32>
    %18 = vector.broadcast %17 : vector<4x8x1xf32> to vector<4x8x8xf32>
    %19 = arith.subf %15, %18 : vector<4x8x8xf32>
    %20 = math.exp %19 : vector<4x8x8xf32>
    %cst_18 = arith.constant dense<0.000000e+00> : vector<4x8xf32>
    %21 = vector.multi_reduction <add>, %20, %cst_18 [2] : vector<4x8x8xf32> to vector<4x8xf32>
    %22 = vector.shape_cast %21 : vector<4x8xf32> to vector<4x8x1xf32>
    %23 = tpu.reciprocal %22 {approx = true} : vector<4x8x1xf32> -> vector<4x8x1xf32>
    %24 = vector.broadcast %23 : vector<4x8x1xf32> to vector<4x8x8xf32>
    %25 = arith.mulf %20, %24 : vector<4x8x8xf32>
    %c0_19 = arith.constant 0 : index
    %c0_20 = arith.constant 0 : index
    %c0_21 = arith.constant 0 : index
    %c0_22 = arith.constant 0 : index
    %26 = vector.load %arg11[%c0_19, %c0_20, %c0_21, %c0_22] : memref<1x4x8x8xf32, #tpu.memory_space<vmem>>, vector<1x4x8x8xf32>
    %27 = vector.shape_cast %26 : vector<1x4x8x8xf32> to vector<4x8x8xf32>
    %28 = vector.shape_cast %25 : vector<4x8x8xf32> to vector<1x4x8x8xf32>
    tpu.vector_store %arg11[%c0_19, %c0_20, %c0_21, %c0_22], %28 {strides = array<i32>} : memref<1x4x8x8xf32, #tpu.memory_space<vmem>>, vector<1x4x8x8xf32>,
    "tpu.trace_start"() <{level = 10 : i32, message = "hqk,khd->qhd"}> : () -> ()
    %cst_23 = arith.constant dense<0.000000e+00> : vector<4x8x8xf32>
    %29 = tpu.matmul %14, %25, %cst_23 {dimension_numbers = #tpu.dot_dimension_numbers<[0], [2], [2], [1], [0, 1, 0, 2, 1, 1], [1], [0]>} : vector<8x4x8xf32>, vector<4x8x8xf32>, vector<4x8x8xf32> -> vector<4x8x8xf32>
    %30 = tpu.transpose %29, [2, 0, 1] : vector<4x8x8xf32> -> vector<8x4x8xf32>
    "tpu.trace_stop"() : () -> ()
    %31 = vector.shape_cast %30 : vector<8x4x8xf32> to vector<8x32xf32>
    %c0_24 = arith.constant 0 : index
    %c0_25 = arith.constant 0 : index
    %32 = vector.load %arg7[%c0_24, %c0_25] : memref<32x32xf32, #tpu.memory_space<vmem>>, vector<32x32xf32>
    %cst_26 = arith.constant dense<0.000000e+00> : vector<8x32xf32>
    %33 = tpu.matmul %31, %32, %cst_26 {dimension_numbers = #tpu.dot_dimension_numbers<[1], [0], [0], [1], [0, 0, 1, 1], [], []>} : vector<8x32xf32>, vector<32x32xf32>, vector<8x32xf32> -> vector<8x32xf32>
    %34 = arith.addf %33, %1 : vector<8x32xf32>
    %cst_27 = arith.constant dense<0.000000e+00> : vector<8xf32>
    %35 = vector.multi_reduction <add>, %34, %cst_27 [1] : vector<8x32xf32> to vector<8xf32>
    %36 = vector.shape_cast %35 : vector<8xf32> to vector<8x1xf32>
    %cst_28 = arith.constant 3.200000e+01 : f32
    %37 = vector.broadcast %cst_28 : f32 to vector<8x1xf32>
    %38 = arith.divf %36, %37 : vector<8x1xf32>
    %39 = vector.broadcast %38 : vector<8x1xf32> to vector<8x32xf32>
    %40 = arith.subf %34, %39 : vector<8x32xf32>
    %41 = arith.mulf %40, %40 : vector<8x32xf32>
    %cst_29 = arith.constant dense<0.000000e+00> : vector<8xf32>
    %42 = vector.multi_reduction <add>, %41, %cst_29 [1] : vector<8x32xf32> to vector<8xf32>
    %43 = vector.shape_cast %42 : vector<8xf32> to vector<8x1xf32>
    %cst_30 = arith.constant 3.200000e+01 : f32
    %44 = vector.broadcast %cst_30 : f32 to vector<8x1xf32>
    %45 = arith.divf %43, %44 : vector<8x1xf32>
    %cst_31 = arith.constant 9.99999997E-7 : f32
    %46 = vector.broadcast %cst_31 : f32 to vector<8x1xf32>
    %47 = arith.addf %45, %46 : vector<8x1xf32>
    %48 = math.rsqrt %47 : vector<8x1xf32>
    %49 = vector.broadcast %48 : vector<8x1xf32> to vector<8x32xf32>
    %50 = arith.mulf %40, %49 : vector<8x32xf32>
    %c0_32 = arith.constant 0 : index
    %c0_33 = arith.constant 0 : index
    %51 = vector.load %arg8[%c0_32, %c0_33] : memref<1x32xf32, #tpu.memory_space<vmem>>, vector<1x32xf32>
    %52 = vector.broadcast %51 : vector<1x32xf32> to vector<8x32xf32>
    %53 = arith.mulf %50, %52 : vector<8x32xf32>
    %c0_34 = arith.constant 0 : index
    %c0_35 = arith.constant 0 : index
    %54 = vector.load %arg9[%c0_34, %c0_35] : memref<1x32xf32, #tpu.memory_space<vmem>>, vector<1x32xf32>
    %55 = vector.broadcast %54 : vector<1x32xf32> to vector<8x32xf32>
    %56 = arith.addf %53, %55 : vector<8x32xf32>
    %c0_36 = arith.constant 0 : index
    %c0_37 = arith.constant 0 : index
    %c0_38 = arith.constant 0 : index
    %57 = vector.load %arg10[%c0_36, %c0_37, %c0_38] : memref<1x8x32xf32, #tpu.memory_space<vmem>>, vector<1x8x32xf32>
    %58 = vector.shape_cast %57 : vector<1x8x32xf32> to vector<8x32xf32>
    %59 = vector.shape_cast %56 : vector<8x32xf32> to vector<1x8x32xf32>
    tpu.vector_store %arg10[%c0_36, %c0_37, %c0_38], %59 {strides = array<i32>} : memref<1x8x32xf32, #tpu.memory_space<vmem>>, vector<1x8x32xf32>,
    return
  }
  func.func @transform_0(%arg0: i32) -> (i32, i32, i32) {
    %c0_i32 = arith.constant 0 : i32
    %c0_i32_0 = arith.constant 0 : i32
    %c0_i32_1 = arith.constant 0 : i32
    return %arg0, %c0_i32, %c0_i32_0 : i32, i32, i32
  }
  func.func @transform_1(%arg0: i32) -> (i32, i32, i32) {
    %c0_i32 = arith.constant 0 : i32
    %c0_i32_0 = arith.constant 0 : i32
    %c0_i32_1 = arith.constant 0 : i32
    return %arg0, %c0_i32, %c0_i32_0 : i32, i32, i32
  }
  func.func @transform_2(%arg0: i32) -> (i32, i32, i32) {
    %c0_i32 = arith.constant 0 : i32
    %c0_i32_0 = arith.constant 0 : i32
    %c0_i32_1 = arith.constant 0 : i32
    return %arg0, %c0_i32, %c0_i32_0 : i32, i32, i32
  }
  func.func @transform_3(%arg0: i32) -> (i32, i32) {
    %c0_i32 = arith.constant 0 : i32
    %c0_i32_0 = arith.constant 0 : i32
    %c0_i32_1 = arith.constant 0 : i32
    return %c0_i32, %c0_i32_0 : i32, i32
  }
  func.func @transform_4(%arg0: i32) -> (i32, i32) {
    %c0_i32 = arith.constant 0 : i32
    %c0_i32_0 = arith.constant 0 : i32
    %c0_i32_1 = arith.constant 0 : i32
    return %c0_i32, %c0_i32_0 : i32, i32
  }
  func.func @transform_5(%arg0: i32) -> (i32, i32) {
    %c0_i32 = arith.constant 0 : i32
    %c0_i32_0 = arith.constant 0 : i32
    %c0_i32_1 = arith.constant 0 : i32
    return %c0_i32, %c0_i32_0 : i32, i32
  }
  func.func @transform_6(%arg0: i32) -> (i32, i32) {
    %c0_i32 = arith.constant 0 : i32
    %c0_i32_0 = arith.constant 0 : i32
    %c0_i32_1 = arith.constant 0 : i32
    return %c0_i32, %c0_i32_0 : i32, i32
  }
  func.func @transform_7(%arg0: i32) -> (i32, i32) {
    %c0_i32 = arith.constant 0 : i32
    %c0_i32_0 = arith.constant 0 : i32
    %c0_i32_1 = arith.constant 0 : i32
    return %c0_i32, %c0_i32_0 : i32, i32
  }
  func.func @transform_8(%arg0: i32) -> (i32, i32) {
    %c0_i32 = arith.constant 0 : i32
    %c0_i32_0 = arith.constant 0 : i32
    %c0_i32_1 = arith.constant 0 : i32
    return %c0_i32, %c0_i32_0 : i32, i32
  }
  func.func @transform_9(%arg0: i32) -> (i32, i32, i32) {
    %c0_i32 = arith.constant 0 : i32
    %c0_i32_0 = arith.constant 0 : i32
    %c0_i32_1 = arith.constant 0 : i32
    return %arg0, %c0_i32, %c0_i32_0 : i32, i32, i32
  }
  func.func @transform_10(%arg0: i32) -> (i32, i32, i32, i32) {
    %c0_i32 = arith.constant 0 : i32
    %c0_i32_0 = arith.constant 0 : i32
    %c0_i32_1 = arith.constant 0 : i32
    %c0_i32_2 = arith.constant 0 : i32
    return %arg0, %c0_i32, %c0_i32_0, %c0_i32_1 : i32, i32, i32, i32
  }
}

</mosaic_0001>

<llo_original>
// kernel: tpu_custom_call.1
$region0: #{tpu_custom_call.1}
  #allocation0 [shape = 'u32[]', space=smem, size = 0x4, offset = 0x4, fixed_abs, tag = 'smem constant byte address 0x4 - core index']
  #allocation1 [shape = 'u32[144,128]{1,0:T(1,128)}', space=vmem, size = 0x12000, scoped, tag = 'internal scratch']
  %s0 = inlined_call_operand.hbm [shape: f32[2,8,32], index: 0, kind: input, shape index: {}]
  %s1 = inlined_call_operand.hbm [shape: f32[2,8,32], index: 1, kind: input, shape index: {}]
  %s2 = inlined_call_operand.hbm [shape: f32[2,8,32], index: 2, kind: input, shape index: {}]
  %s3 = inlined_call_operand.hbm [shape: f32[32,32], index: 3, kind: input, shape index: {}]
  %s4 = inlined_call_operand.hbm [shape: f32[32,32], index: 4, kind: input, shape index: {}]
  %s5 = inlined_call_operand.hbm [shape: f32[32,32], index: 5, kind: input, shape index: {}]
  %s6 = inlined_call_operand.hbm [shape: f32[32,32], index: 6, kind: input, shape index: {}]
  %s7 = inlined_call_operand.vmem [shape: f32[1,32], index: 7, kind: input, shape index: {}]
  %s8 = inlined_call_operand.vmem [shape: f32[1,32], index: 8, kind: input, shape index: {}]
  %s9 = inlined_call_operand.hbm [shape: f32[2,8,32], index: 9, kind: output, shape index: {0}]
  %s10 = inlined_call_operand.hbm [shape: f32[2,4,8,8], index: 10, kind: output, shape index: {1}]
  %11 = xla_tuple %s9, %s10
  %s12 = sld [smem:[#allocation0]]
  $region105: #{tpu_custom_call.1} parent=0
    _
  %s14 = ssub.s32 1, %s12
  %s15 = scalar_select 0, %s14, %s12
  $region1: #{tpu_custom_call.1} parent=0
    #allocation2 [shape = 'u8[8192]{0}', space=vmem, size = 0x2000, scoped, tag = 'input window, operand 0']
    #allocation3 [shape = 's32[2]{0}', space=sflag, size = 0x8, scoped, tag = 'scoped memory for tpu_custom_call.1']
    #allocation4 [shape = 's32[2]{0}', space=sflag, size = 0x8, scoped, tag = 'scoped memory for tpu_custom_call.1']
    #allocation5 [shape = 'u8[8192]{0}', space=vmem, size = 0x2000, scoped, tag = 'input window, operand 1']
    #allocation6 [shape = 's32[2]{0}', space=sflag, size = 0x8, scoped, tag = 'scoped memory for tpu_custom_call.1']
    #allocation7 [shape = 'u8[8192]{0}', space=vmem, size = 0x2000, scoped, tag = 'input window, operand 2']
    #allocation8 [shape = 'u8[16384]{0}', space=vmem, size = 0x4000, scoped, tag = 'input window, operand 3, single buffered']
    #allocation9 [shape = 's32[1]{0}', space=sflag, size = 0x4, scoped, tag = 'scoped memory for tpu_custom_call.1']
    #allocation10 [shape = 'u8[16384]{0}', space=vmem, size = 0x4000, scoped, tag = 'input window, operand 4, single buffered']
    #allocation11 [shape = 'u8[16384]{0}', space=vmem, size = 0x4000, scoped, tag = 'input window, operand 5, single buffered']
    #allocation12 [shape = 's32[1]{0}', space=sflag, size = 0x4, scoped, tag = 'scoped memory for tpu_custom_call.1']
    #allocation13 [shape = 'u8[16384]{0}', space=vmem, size = 0x4000, scoped, tag = 'input window, operand 6, single buffered']
    #allocation14 [shape = 'u8[8192]{0}', space=vmem, size = 0x2000, scoped, tag = 'output window, operand 0']
    #allocation15 [shape = 'u8[32768]{0}', space=vmem, size = 0x8000, scoped, tag = 'output window, operand 1']
    #allocation16 [shape = 's32[2]{0}', space=sflag, size = 0x8, scoped, tag = 'scoped memory for tpu_custom_call.1']
    %16 = vsyncpa [#allocation3], 0
    %s17 = scalar_lea.sflag [#allocation3], 1
    %18 = vsyncpa %s17, 0
    %19 = vsyncpa [#allocation6], 0
    %s20 = scalar_lea.sflag [#allocation6], 1
    %21 = vsyncpa %s20, 0
    %22 = vsyncpa [#allocation9], 0
    %23 = vsyncpa [#allocation12], 0
    %24 = vsyncpa [#allocation4], 0
    %s25 = scalar_lea.sflag [#allocation4], 1
    %26 = vsyncpa %s25, 0
    %27 = vsyncpa [#allocation16], 0
    %s28 = scalar_lea.sflag [#allocation16], 1
    %29 = vsyncpa %s28, 0
    loop: start=0, step=1, limit=4
    $region2: #{tpu_custom_call.1} parent=1 // loop_pre_header
      _
    $region3: #{tpu_custom_call.1} parent=1 // loop_header
      %s31 = sphi 0, %s35
      %p32 = scmp.ge.s32.totalorder %s31, 4
      %s41 = sphi 0, %s43
      %s44 = sphi 0, %s41
      %s45 = sphi 0, %s44
      %s61 = sphi 0, %s45
      %s67 = sphi 0, %s69
      %s70 = sphi 0, %s67
      %s71 = sphi 0, %s70
      %s87 = sphi 0, %s71
      %s93 = sphi 0, %s95
      %s96 = sphi 0, %s93
      %s97 = sphi 0, %s96
      %s113 = sphi 0, %s97
      %s117 = sphi 0, %s117
      %s119 = sphi 0, %s117
      %s120 = sphi 0, %s119
      %s134 = sphi 0, %s120
      %s138 = sphi 0, %s138
      %s140 = sphi 0, %s138
      %s141 = sphi 0, %s140
      %s155 = sphi 0, %s141
      %s159 = sphi 0, %s159
      %s161 = sphi 0, %s159
      %s162 = sphi 0, %s161
      %s176 = sphi 0, %s162
      %s180 = sphi 0, %s180
      %s182 = sphi 0, %s180
      %s183 = sphi 0, %s182
      %s197 = sphi 0, %s183
      %s201 = sphi 0, %s201
      %s203 = sphi 0, %s201
      %s204 = sphi 0, %s203
      %s218 = sphi 0, %s204
      %s222 = sphi 0, %s222
      %s224 = sphi 0, %s222
      %s225 = sphi 0, %s224
      %s239 = sphi 0, %s225
      %s245 = sphi 0, %s247
      %s248 = sphi 0, %s245
      %s249 = sphi 0, %s248
      %s265 = sphi 0, %s249
      %s271 = sphi 0, %s273
      %s274 = sphi 0, %s271
      %s275 = sphi 0, %s274
      %s291 = sphi 0, %s275
    $region4: #{tpu_custom_call.1} parent=1 // loop_header_branch
      %34 = sbr.rel (%p32) target = $region8
    $region5: #{tpu_custom_call.1} parent=1 // loop_body
      %s36 = ssub.s32 %s31, 1
      %s37 = ssub.s32 %s31, 2
      %s38 = sadd.s32 %s31, 1
      %s39 = ssub.s32 %s31, %s38
      %p40 = scmp.eq.s32.totalorder %s39, 0
      %s42 = sadd.s32 %s41, 1
      %s43 = scalar_select %p40, %s41, %s42
      %p46 = pneg %p40
      %p47 = scmp.eq.s32.totalorder %s31, 1
      %p48 = por %p46, %p47
      %p49 = scmp.ne.s32.totalorder %s41, %s44
      %p50 = scmp.eq.s32.totalorder %s31, 0
      %p51 = por %p49, %p50
      %p52 = scmp.ne.s32.totalorder %s41, %s44
      %p53 = scmp.eq.s32.totalorder %s36, 1
      %p54 = por %p52, %p53
      %p55 = scmp.ne.s32.totalorder %s44, %s45
      %p56 = scmp.eq.s32.totalorder %s36, 0
      %p57 = por %p55, %p56
      %p58 = scmp.ne.s32.totalorder %s44, %s45
      %p59 = scmp.eq.s32.totalorder %s37, 1
      %p60 = por %p58, %p59
      %p62 = scmp.ne.s32.totalorder %s45, %s61
      %p63 = scmp.eq.s32.totalorder %s37, 0
      %p64 = por %p62, %p63
      %s65 = ssub.s32 %s31, %s38
      %p66 = scmp.eq.s32.totalorder %s65, 0
      %s68 = sadd.s32 %s67, 1
      %s69 = scalar_select %p66, %s67, %s68
      %p72 = pneg %p66
      %p73 = scmp.eq.s32.totalorder %s31, 1
      %p74 = por %p72, %p73
      %p75 = scmp.ne.s32.totalorder %s67, %s70
      %p76 = scmp.eq.s32.totalorder %s31, 0
      %p77 = por %p75, %p76
      %p78 = scmp.ne.s32.totalorder %s67, %s70
      %p79 = scmp.eq.s32.totalorder %s36, 1
      %p80 = por %p78, %p79
      %p81 = scmp.ne.s32.totalorder %s70, %s71
      %p82 = scmp.eq.s32.totalorder %s36, 0
      %p83 = por %p81, %p82
      %p84 = scmp.ne.s32.totalorder %s70, %s71
      %p85 = scmp.eq.s32.totalorder %s37, 1
      %p86 = por %p84, %p85
      %p88 = scmp.ne.s32.totalorder %s71, %s87
      %p89 = scmp.eq.s32.totalorder %s37, 0
      %p90 = por %p88, %p89
      %s91 = ssub.s32 %s31, %s38
      %p92 = scmp.eq.s32.totalorder %s91, 0
      %s94 = sadd.s32 %s93, 1
      %s95 = scalar_select %p92, %s93, %s94
      %p98 = pneg %p92
      %p99 = scmp.eq.s32.totalorder %s31, 1
      %p100 = por %p98, %p99
      %p101 = scmp.ne.s32.totalorder %s93, %s96
      %p102 = scmp.eq.s32.totalorder %s31, 0
      %p103 = por %p101, %p102
      %p104 = scmp.ne.s32.totalorder %s93, %s96
      %p105 = scmp.eq.s32.totalorder %s36, 1
      %p106 = por %p104, %p105
      %p107 = scmp.ne.s32.totalorder %s96, %s97
      %p108 = scmp.eq.s32.totalorder %s36, 0
      %p109 = por %p107, %p108
      %p110 = scmp.ne.s32.totalorder %s96, %s97
      %p111 = scmp.eq.s32.totalorder %s37, 1
      %p112 = por %p110, %p111
      %p114 = scmp.ne.s32.totalorder %s97, %s113
      %p115 = scmp.eq.s32.totalorder %s37, 0
      %p116 = por %p114, %p115
      %s118 = sadd.s32 %s117, 1
      %p121 = scmp.eq.s32.totalorder %s31, 1
      %p122 = scmp.ne.s32.totalorder %s117, %s119
      %p123 = scmp.eq.s32.totalorder %s31, 0
      %p124 = por %p122, %p123
      %p125 = scmp.ne.s32.totalorder %s117, %s119
      %p126 = scmp.eq.s32.totalorder %s36, 1
      %p127 = por %p125, %p126
      %p128 = scmp.ne.s32.totalorder %s119, %s120
      %p129 = scmp.eq.s32.totalorder %s36, 0
      %p130 = por %p128, %p129
      %p131 = scmp.ne.s32.totalorder %s119, %s120
      %p132 = scmp.eq.s32.totalorder %s37, 1
      %p133 = por %p131, %p132
      %p135 = scmp.ne.s32.totalorder %s120, %s134
      %p136 = scmp.eq.s32.totalorder %s37, 0
      %p137 = por %p135, %p136
      %s139 = sadd.s32 %s138, 1
      %p142 = scmp.eq.s32.totalorder %s31, 1
      %p143 = scmp.ne.s32.totalorder %s138, %s140
      %p144 = scmp.eq.s32.totalorder %s31, 0
      %p145 = por %p143, %p144
      %p146 = scmp.ne.s32.totalorder %s138, %s140
      %p147 = scmp.eq.s32.totalorder %s36, 1
      %p148 = por %p146, %p147
      %p149 = scmp.ne.s32.totalorder %s140, %s141
      %p150 = scmp.eq.s32.totalorder %s36, 0
      %p151 = por %p149, %p150
      %p152 = scmp.ne.s32.totalorder %s140, %s141
      %p153 = scmp.eq.s32.totalorder %s37, 1
      %p154 = por %p152, %p153
      %p156 = scmp.ne.s32.totalorder %s141, %s155
      %p157 = scmp.eq.s32.totalorder %s37, 0
      %p158 = por %p156, %p157
      %s160 = sadd.s32 %s159, 1
      %p163 = scmp.eq.s32.totalorder %s31, 1
      %p164 = scmp.ne.s32.totalorder %s159, %s161
      %p165 = scmp.eq.s32.totalorder %s31, 0
      %p166 = por %p164, %p165
      %p167 = scmp.ne.s32.totalorder %s159, %s161
      %p168 = scmp.eq.s32.totalorder %s36, 1
      %p169 = por %p167, %p168
      %p170 = scmp.ne.s32.totalorder %s161, %s162
      %p171 = scmp.eq.s32.totalorder %s36, 0
      %p172 = por %p170, %p171
      %p173 = scmp.ne.s32.totalorder %s161, %s162
      %p174 = scmp.eq.s32.totalorder %s37, 1
      %p175 = por %p173, %p174
      %p177 = scmp.ne.s32.totalorder %s162, %s176
      %p178 = scmp.eq.s32.totalorder %s37, 0
      %p179 = por %p177, %p178
      %s181 = sadd.s32 %s180, 1
      %p184 = scmp.eq.s32.totalorder %s31, 1
      %p185 = scmp.ne.s32.totalorder %s180, %s182
      %p186 = scmp.eq.s32.totalorder %s31, 0
      %p187 = por %p185, %p186
      %p188 = scmp.ne.s32.totalorder %s180, %s182
      %p189 = scmp.eq.s32.totalorder %s36, 1
      %p190 = por %p188, %p189
      %p191 = scmp.ne.s32.totalorder %s182, %s183
      %p192 = scmp.eq.s32.totalorder %s36, 0
      %p193 = por %p191, %p192
      %p194 = scmp.ne.s32.totalorder %s182, %s183
      %p195 = scmp.eq.s32.totalorder %s37, 1
      %p196 = por %p194, %p195
      %p198 = scmp.ne.s32.totalorder %s183, %s197
      %p199 = scmp.eq.s32.totalorder %s37, 0
      %p200 = por %p198, %p199
      %s202 = sadd.s32 %s201, 1
      %p205 = scmp.eq.s32.totalorder %s31, 1
      %p206 = scmp.ne.s32.totalorder %s201, %s203
      %p207 = scmp.eq.s32.totalorder %s31, 0
      %p208 = por %p206, %p207
      %p209 = scmp.ne.s32.totalorder %s201, %s203
      %p210 = scmp.eq.s32.totalorder %s36, 1
      %p211 = por %p209, %p210
      %p212 = scmp.ne.s32.totalorder %s203, %s204
      %p213 = scmp.eq.s32.totalorder %s36, 0
      %p214 = por %p212, %p213
      %p215 = scmp.ne.s32.totalorder %s203, %s204
      %p216 = scmp.eq.s32.totalorder %s37, 1
      %p217 = por %p215, %p216
      %p219 = scmp.ne.s32.totalorder %s204, %s218
      %p220 = scmp.eq.s32.totalorder %s37, 0
      %p221 = por %p219, %p220
      %s223 = sadd.s32 %s222, 1
      %p226 = scmp.eq.s32.totalorder %s31, 1
      %p227 = scmp.ne.s32.totalorder %s222, %s224
      %p228 = scmp.eq.s32.totalorder %s31, 0
      %p229 = por %p227, %p228
      %p230 = scmp.ne.s32.totalorder %s222, %s224
      %p231 = scmp.eq.s32.totalorder %s36, 1
      %p232 = por %p230, %p231
      %p233 = scmp.ne.s32.totalorder %s224, %s225
      %p234 = scmp.eq.s32.totalorder %s36, 0
      %p235 = por %p233, %p234
      %p236 = scmp.ne.s32.totalorder %s224, %s225
      %p237 = scmp.eq.s32.totalorder %s37, 1
      %p238 = por %p236, %p237
      %p240 = scmp.ne.s32.totalorder %s225, %s239
      %p241 = scmp.eq.s32.totalorder %s37, 0
      %p242 = por %p240, %p241
      %s243 = ssub.s32 %s31, %s38
      %p244 = scmp.eq.s32.totalorder %s243, 0
      %s246 = sadd.s32 %s245, 1
      %s247 = scalar_select %p244, %s245, %s246
      %p250 = pneg %p244
      %p251 = scmp.eq.s32.totalorder %s31, 1
      %p252 = por %p250, %p251
      %p253 = scmp.ne.s32.totalorder %s245, %s248
      %p254 = scmp.eq.s32.totalorder %s31, 0
      %p255 = por %p253, %p254
      %p256 = scmp.ne.s32.totalorder %s245, %s248
      %p257 = scmp.eq.s32.totalorder %s36, 1
      %p258 = por %p256, %p257
      %p259 = scmp.ne.s32.totalorder %s248, %s249
      %p260 = scmp.eq.s32.totalorder %s36, 0
      %p261 = por %p259, %p260
      %p262 = scmp.ne.s32.totalorder %s248, %s249
      %p263 = scmp.eq.s32.totalorder %s37, 1
      %p264 = por %p262, %p263
      %p266 = scmp.ne.s32.totalorder %s249, %s265
      %p267 = scmp.eq.s32.totalorder %s37, 0
      %p268 = por %p266, %p267
      %s269 = ssub.s32 %s31, %s38
      %p270 = scmp.eq.s32.totalorder %s269, 0
      %s272 = sadd.s32 %s271, 1
      %s273 = scalar_select %p270, %s271, %s272
      %p276 = pneg %p270
      %p277 = scmp.eq.s32.totalorder %s31, 1
      %p278 = por %p276, %p277
      %p279 = scmp.ne.s32.totalorder %s271, %s274
      %p280 = scmp.eq.s32.totalorder %s31, 0
      %p281 = por %p279, %p280
      %p282 = scmp.ne.s32.totalorder %s271, %s274
      %p283 = scmp.eq.s32.totalorder %s36, 1
      %p284 = por %p282, %p283
      %p285 = scmp.ne.s32.totalorder %s274, %s275
      %p286 = scmp.eq.s32.totalorder %s36, 0
      %p287 = por %p285, %p286
      %p288 = scmp.ne.s32.totalorder %s274, %s275
      %p289 = scmp.eq.s32.totalorder %s37, 1
      %p290 = por %p288, %p289
      %p292 = scmp.ne.s32.totalorder %s275, %s291
      %p293 = scmp.eq.s32.totalorder %s37, 0
      %p294 = por %p292, %p293
      %p295 = scmp.le.s32.totalorder 1, %s31
      %p296 = scmp.lt.s32.totalorder %s31, 3
      %p297 = pnand %p295, %p296
      %p298 = pneg %p297
      // Predicated region
      $region9: #{tpu_custom_call.1} parent=5 // pred_check
        _
      $region10: #{tpu_custom_call.1} parent=5 // pred_check_branch
        %300 = sbr.rel (%p297) target = $region12
      $region11: #{tpu_custom_call.1} parent=5 // pred_region
        %s301 = ssub.s32 %s31, 1
        // Predicated region
        $region13: #{tpu_custom_call.1} parent=11 // pred_check
          %p302 = pneg %p130
        $region14: #{tpu_custom_call.1} parent=11 // pred_check_branch
          %304 = sbr.rel (%p302) target = $region16
        $region15: #{tpu_custom_call.1} parent=11 // pred_region
          %s306 = ssub.s32 512, 512
          %307 = vsyncadd [#allocation9], %s306
          %s308 = sshll.u32 [#allocation8], 4
          %s309 = int_to_ptr.vmem [resolvable:$true] %s308
          %314 = dma.hbm_to_vmem [thread:$0]  %s3, 512, %s309, [#allocation9], 128, 128, 8
        $region16: #{tpu_custom_call.1} parent=11 // pred_fallthru
          _
        // Predicated region
        $region17: #{tpu_custom_call.1} parent=11 // pred_check
          %p315 = pneg %p151
        $region18: #{tpu_custom_call.1} parent=11 // pred_check_branch
          %317 = sbr.rel (%p315) target = $region20
        $region19: #{tpu_custom_call.1} parent=11 // pred_region
          %s319 = ssub.s32 512, 512
          %320 = vsyncadd [#allocation9], %s319
          %s321 = sshll.u32 [#allocation10], 4
          %s322 = int_to_ptr.vmem [resolvable:$true] %s321
          %327 = dma.hbm_to_vmem [thread:$0]  %s4, 512, %s322, [#allocation9], 128, 128, 8
        $region20: #{tpu_custom_call.1} parent=11 // pred_fallthru
          _
        // Predicated region
        $region21: #{tpu_custom_call.1} parent=11 // pred_check
          %p328 = pneg %p172
        $region22: #{tpu_custom_call.1} parent=11 // pred_check_branch
          %330 = sbr.rel (%p328) target = $region24
        $region23: #{tpu_custom_call.1} parent=11 // pred_region
          %s332 = ssub.s32 512, 512
          %333 = vsyncadd [#allocation12], %s332
          %s334 = sshll.u32 [#allocation11], 4
          %s335 = int_to_ptr.vmem [resolvable:$true] %s334
          %340 = dma.hbm_to_vmem [thread:$0]  %s5, 512, %s335, [#allocation12], 128, 128, 8
        $region24: #{tpu_custom_call.1} parent=11 // pred_fallthru
          _
        // Predicated region
        $region25: #{tpu_custom_call.1} parent=11 // pred_check
          %p341 = pneg %p193
        $region26: #{tpu_custom_call.1} parent=11 // pred_check_branch
          %343 = sbr.rel (%p341) target = $region28
        $region27: #{tpu_custom_call.1} parent=11 // pred_region
          %s345 = ssub.s32 512, 512
          %346 = vsyncadd [#allocation12], %s345
          %s347 = sshll.u32 [#allocation13], 4
          %s348 = int_to_ptr.vmem [resolvable:$true] %s347
          %353 = dma.hbm_to_vmem [thread:$0]  %s6, 512, %s348, [#allocation12], 128, 128, 8
        $region28: #{tpu_custom_call.1} parent=11 // pred_fallthru
          _
        // Predicated region
        $region29: #{tpu_custom_call.1} parent=11 // pred_check
          %p354 = pneg %p214
        $region30: #{tpu_custom_call.1} parent=11 // pred_check_branch
          %356 = sbr.rel (%p354) target = $region32
        $region31: #{tpu_custom_call.1} parent=11 // pred_region
          _
        $region32: #{tpu_custom_call.1} parent=11 // pred_fallthru
          _
        // Predicated region
        $region33: #{tpu_custom_call.1} parent=11 // pred_check
          %p357 = pneg %p235
        $region34: #{tpu_custom_call.1} parent=11 // pred_check_branch
          %359 = sbr.rel (%p357) target = $region36
        $region35: #{tpu_custom_call.1} parent=11 // pred_region
          _
        $region36: #{tpu_custom_call.1} parent=11 // pred_fallthru
          _
      $region12: #{tpu_custom_call.1} parent=5 // pred_fallthru
        _
      %p360 = scmp.lt.s32.totalorder %s31, 2
      // Predicated region
      $region37: #{tpu_custom_call.1} parent=5 // pred_check
        %p361 = pneg %p360
      $region38: #{tpu_custom_call.1} parent=5 // pred_check_branch
        %363 = sbr.rel (%p361) target = $region40
      $region39: #{tpu_custom_call.1} parent=5 // pred_region
        // Predicated region
        $region41: #{tpu_custom_call.1} parent=39 // pred_check
          %p364 = pneg %p51
        $region42: #{tpu_custom_call.1} parent=39 // pred_check_branch
          %366 = sbr.rel (%p364) target = $region44
        $region43: #{tpu_custom_call.1} parent=39 // pred_region
          %s367 = sand.u32 %s41, 1
          %s368 = scalar_lea.sflag [#allocation3], %s367
          %s369 = sand.u32 %s41, 1
          %s370 = smul.addr %s369, 8
          %s371 = scalar_lea.vmem [#allocation2], %s370
          %s373 = ssub.s32 128, 128
          %374 = vsyncadd %s368, %s373
          %s375 = smul.addr %s31, 128
          %s376 = scalar_lea.hbm %s0, %s375
          %s378 = sshll.u32 %s371, 4
          %s379 = int_to_ptr.vmem [resolvable:$true] %s378
          %381 = dma.hbm_to_vmem [thread:$0]  %s376, 128, %s379, %s368
        $region44: #{tpu_custom_call.1} parent=39 // pred_fallthru
          _
        // Predicated region
        $region45: #{tpu_custom_call.1} parent=39 // pred_check
          %p382 = pneg %p77
        $region46: #{tpu_custom_call.1} parent=39 // pred_check_branch
          %384 = sbr.rel (%p382) target = $region48
        $region47: #{tpu_custom_call.1} parent=39 // pred_region
          %s385 = sand.u32 %s31, 1
          %s386 = scalar_lea.sflag [#allocation6], %s385
          %s387 = sand.u32 %s67, 1
          %s388 = smul.addr %s387, 8
          %s389 = scalar_lea.vmem [#allocation5], %s388
          %s391 = ssub.s32 128, 128
          %392 = vsyncadd %s386, %s391
          %s393 = smul.addr %s31, 128
          %s394 = scalar_lea.hbm %s1, %s393
          %s396 = sshll.u32 %s389, 4
          %s397 = int_to_ptr.vmem [resolvable:$true] %s396
          %399 = dma.hbm_to_vmem [thread:$0]  %s394, 128, %s397, %s386
        $region48: #{tpu_custom_call.1} parent=39 // pred_fallthru
          _
        // Predicated region
        $region49: #{tpu_custom_call.1} parent=39 // pred_check
          %p400 = pneg %p103
        $region50: #{tpu_custom_call.1} parent=39 // pred_check_branch
          %402 = sbr.rel (%p400) target = $region52
        $region51: #{tpu_custom_call.1} parent=39 // pred_region
          %s403 = sand.u32 %s31, 1
          %s404 = scalar_lea.sflag [#allocation6], %s403
          %s405 = sand.u32 %s93, 1
          %s406 = smul.addr %s405, 8
          %s407 = scalar_lea.vmem [#allocation7], %s406
          %s409 = ssub.s32 128, 128
          %410 = vsyncadd %s404, %s409
          %s411 = smul.addr %s31, 128
          %s412 = scalar_lea.hbm %s2, %s411
          %s414 = sshll.u32 %s407, 4
          %s415 = int_to_ptr.vmem [resolvable:$true] %s414
          %417 = dma.hbm_to_vmem [thread:$0]  %s412, 128, %s415, %s404
        $region52: #{tpu_custom_call.1} parent=39 // pred_fallthru
          _
      $region40: #{tpu_custom_call.1} parent=5 // pred_fallthru
        _
      %p418 = scmp.le.s32.totalorder 1, %s31
      %p419 = scmp.lt.s32.totalorder %s31, 3
      %p420 = pnand %p418, %p419
      %p421 = pneg %p420
      // Predicated region
      $region53: #{tpu_custom_call.1} parent=5 // pred_check
        _
      $region54: #{tpu_custom_call.1} parent=5 // pred_check_branch
        %423 = sbr.rel (%p420) target = $region56
      $region55: #{tpu_custom_call.1} parent=5 // pred_region
        %s424 = ssub.s32 %s31, 1
        %s425 = sand.u32 %s44, 1
        %s426 = scalar_lea.sflag [#allocation3], %s425
        %s427 = sand.u32 %s44, 1
        %s428 = smul.addr %s427, 8
        %s429 = scalar_lea.vmem [#allocation2], %s428
        // Predicated region
        $region57: #{tpu_custom_call.1} parent=55 // pred_check
          %p430 = pneg %p57
        $region58: #{tpu_custom_call.1} parent=55 // pred_check_branch
          %432 = sbr.rel (%p430) target = $region60
        $region59: #{tpu_custom_call.1} parent=55 // pred_region
          %433 = dma.done %s426, 128
        $region60: #{tpu_custom_call.1} parent=55 // pred_fallthru
          _
        %s434 = sand.u32 %s36, 1
        %s435 = scalar_lea.sflag [#allocation6], %s434
        %s436 = sand.u32 %s70, 1
        %s437 = smul.addr %s436, 8
        %s438 = scalar_lea.vmem [#allocation5], %s437
        // Predicated region
        $region61: #{tpu_custom_call.1} parent=55 // pred_check
          %p439 = pneg %p83
        $region62: #{tpu_custom_call.1} parent=55 // pred_check_branch
          %441 = sbr.rel (%p439) target = $region64
        $region63: #{tpu_custom_call.1} parent=55 // pred_region
          %442 = dma.done %s435, 128
        $region64: #{tpu_custom_call.1} parent=55 // pred_fallthru
          _
        %s443 = sand.u32 %s36, 1
        %s444 = scalar_lea.sflag [#allocation6], %s443
        %s445 = sand.u32 %s96, 1
        %s446 = smul.addr %s445, 8
        %s447 = scalar_lea.vmem [#allocation7], %s446
        // Predicated region
        $region65: #{tpu_custom_call.1} parent=55 // pred_check
          %p448 = pneg %p109
        $region66: #{tpu_custom_call.1} parent=55 // pred_check_branch
          %450 = sbr.rel (%p448) target = $region68
        $region67: #{tpu_custom_call.1} parent=55 // pred_region
          %451 = dma.done %s444, 128
        $region68: #{tpu_custom_call.1} parent=55 // pred_fallthru
          _
        // Predicated region
        $region69: #{tpu_custom_call.1} parent=55 // pred_check
          %p452 = pneg %p130
        $region70: #{tpu_custom_call.1} parent=55 // pred_check_branch
          %454 = sbr.rel (%p452) target = $region72
        $region71: #{tpu_custom_call.1} parent=55 // pred_region
          %455 = dma.done [#allocation9], 512
        $region72: #{tpu_custom_call.1} parent=55 // pred_fallthru
          _
        // Predicated region
        $region73: #{tpu_custom_call.1} parent=55 // pred_check
          %p456 = pneg %p151
        $region74: #{tpu_custom_call.1} parent=55 // pred_check_branch
          %458 = sbr.rel (%p456) target = $region76
        $region75: #{tpu_custom_call.1} parent=55 // pred_region
          %459 = dma.done [#allocation9], 512
        $region76: #{tpu_custom_call.1} parent=55 // pred_fallthru
          _
        // Predicated region
        $region77: #{tpu_custom_call.1} parent=55 // pred_check
          %p460 = pneg %p172
        $region78: #{tpu_custom_call.1} parent=55 // pred_check_branch
          %462 = sbr.rel (%p460) target = $region80
        $region79: #{tpu_custom_call.1} parent=55 // pred_region
          %463 = dma.done [#allocation12], 512
        $region80: #{tpu_custom_call.1} parent=55 // pred_fallthru
          _
        // Predicated region
        $region81: #{tpu_custom_call.1} parent=55 // pred_check
          %p464 = pneg %p193
        $region82: #{tpu_custom_call.1} parent=55 // pred_check_branch
          %466 = sbr.rel (%p464) target = $region84
        $region83: #{tpu_custom_call.1} parent=55 // pred_region
          %467 = dma.done [#allocation12], 512
        $region84: #{tpu_custom_call.1} parent=55 // pred_fallthru
          _
        %s468 = sand.u32 %s44, 1
        %s469 = scalar_lea.sflag [#allocation3], %s468
        %s470 = sand.u32 %s44, 1
        %s471 = smul.addr %s470, 8
        %s472 = scalar_lea.vmem [#allocation2], %s471
        %p473 = pneg %p57
        %p474 = pneg %p54
        %s475 = sand.u32 %s36, 1
        %s476 = scalar_lea.sflag [#allocation6], %s475
        %s477 = sand.u32 %s70, 1
        %s478 = smul.addr %s477, 8
        %s479 = scalar_lea.vmem [#allocation5], %s478
        %p480 = pneg %p83
        %p481 = pneg %p80
        %s482 = sand.u32 %s36, 1
        %s483 = scalar_lea.sflag [#allocation6], %s482
        %s484 = sand.u32 %s96, 1
        %s485 = smul.addr %s484, 8
        %s486 = scalar_lea.vmem [#allocation7], %s485
        %p487 = pneg %p109
        %p488 = pneg %p106
        %p489 = pneg %p130
        %p490 = pneg %p127
        %p491 = pneg %p151
        %p492 = pneg %p148
        %p493 = pneg %p172
        %p494 = pneg %p169
        %p495 = pneg %p193
        %p496 = pneg %p190
        %p497 = pneg %p214
        %p498 = pneg %p211
        %p499 = pneg %p235
        %p500 = pneg %p232
        %p501 = pneg %p261
        %p502 = pneg %p258
        %s503 = sand.u32 %s248, 1
        %s504 = scalar_lea.sflag [#allocation4], %s503
        %s505 = sand.u32 %s248, 1
        %s506 = smul.addr %s505, 8
        %s507 = scalar_lea.vmem [#allocation14], %s506
        %p508 = pneg %p287
        %p509 = pneg %p284
        %s510 = sand.u32 %s274, 1
        %s511 = scalar_lea.sflag [#allocation16], %s510
        %s512 = sand.u32 %s274, 1
        %s513 = smul.addr %s512, 32
        %s514 = scalar_lea.vmem [#allocation15], %s513
        %v515 = vld [vmem:[%s429] sm:$0xff]
        %v516 = vld [vmem:[%s438] sm:$0xff]
        %v517 = vld [vmem:[%s447] sm:$0xff]
        %v518 = vld [vmem:[#allocation8] sm:$0xff]
        %v519 = vld [vmem:[#allocation8 + $0x8] sm:$0xff]
        %v520 = vld [vmem:[#allocation8 + $0x10] sm:$0xff]
        %v521 = vld [vmem:[#allocation8 + $0x18] sm:$0xff]
        %vm522 = vcmask 261120
        %v524 = vsel %vm522, %v515, 0
        %526 = vmatprep.subr.mxu0 0.0
        %527 = vmatpush1.msra.mxu0 %v518
        %528 = vmatprep.subr.mxu0 0.0
        %529 = vmatpush1.msra.mxu0 %v519
        %530 = vmatprep.subr.mxu0 0.0
        %531 = vmatpush1.msra.mxu0 %v520
        %532 = vmatprep.subr.mxu0 0.0
        %533 = vmatpush1.msra.mxu0 %v521
        %534 = vmatprep.subr.mxu0 0.0
        %535 = vmatpush1.msra.mxu0 0.0
        %536 = vmatprep.subr.mxu0 0.0
        %537 = vmatpush1.msra.mxu0 0.0
        %538 = vmatprep.subr.mxu0 0.0
        %539 = vmatpush1.msra.mxu0 0.0
        %540 = vmatprep.subr.mxu0 0.0
        %541 = vmatpush1.msra.mxu0 0.0
        %542 = vmatprep.subr.mxu0 0.0
        %543 = vmatpush1.msra.mxu0 0.0
        %544 = vmatprep.subr.mxu0 0.0
        %545 = vmatpush1.msra.mxu0 0.0
        %546 = vmatprep.subr.mxu0 0.0
        %547 = vmatpush1.msra.mxu0 0.0
        %548 = vmatprep.subr.mxu0 0.0
        %549 = vmatpush1.msra.mxu0 0.0
        %550 = vmatprep.subr.mxu0 0.0
        %551 = vmatpush1.msra.mxu0 0.0
        %552 = vmatprep.subr.mxu0 0.0
        %553 = vmatpush1.msra.mxu0 0.0
        %554 = vmatprep.subr.mxu0 0.0
        %555 = vmatpush1.msra.mxu0 0.0
        %556 = vmatprep.subr.mxu0 0.0
        %557 = vmatpush1.msra.mxu0 0.0
        %558 = vmatprep.subr.mxu0 0.0
        %559 = vmatpush1.msra.mxu0 0.0
        %560 = vmatprep.subr.mxu0 0.0
        %561 = vmatpush1.msra.mxu0 0.0
        %562 = vmatprep.subr.mxu0 0.0
        %563 = vmatpush1.msra.mxu0 0.0
        %564 = vmatprep.subr.mxu0 0.0
        %565 = vmatpush1.msra.mxu0 0.0
        %566 = vmatprep.subr.mxu0 0.0
        %567 = vmatpush1.msra.mxu0 0.0
        %568 = vmatprep.subr.mxu0 0.0
        %569 = vmatpush1.msra.mxu0 0.0
        %570 = vmatprep.subr.mxu0 0.0
        %571 = vmatpush1.msra.mxu0 0.0
        %572 = vmatprep.subr.mxu0 0.0
        %573 = vmatpush1.msra.mxu0 0.0
        %574 = vmatprep.subr.mxu0 0.0
        %575 = vmatpush1.msra.mxu0 0.0
        %576 = vmatprep.subr.mxu0 0.0
        %577 = vmatpush1.msra.mxu0 0.0
        %578 = vmatprep.subr.mxu0 0.0
        %579 = vmatpush1.msra.mxu0 0.0
        %580 = vmatprep.subr.mxu0 0.0
        %581 = vmatpush1.msra.mxu0 0.0
        %582 = vmatprep.subr.mxu0 0.0
        %583 = vmatpush1.msra.mxu0 0.0
        %584 = vmatprep.subr.mxu0 0.0
        %585 = vmatpush1.msra.mxu0 0.0
        %586 = vmatprep.subr.mxu0 0.0
        %587 = vmatpush1.msra.mxu0 0.0
        %588 = vmatprep.subr.mxu0 0.0
        %589 = vmatpush1.msra.mxu0 0.0
        %590 = vmatprep.mubr.f32.mxu0 0.0
        %591 = vmatmul.mubr.f32.gmra.mrb[0].mxu0 %v524
        %v592 = vpop.f32.mrb[0].mxu0
        %v593 = vadd.f32 0.0, %v592
        %v594 = vpop.f32.mrb[0].mxu0
        %595 = vdwg.mxu0
        %v596 = vld [vmem:[#allocation10] sm:$0xff]
        %v597 = vld [vmem:[#allocation10 + $0x8] sm:$0xff]
        %v598 = vld [vmem:[#allocation10 + $0x10] sm:$0xff]
        %v599 = vld [vmem:[#allocation10 + $0x18] sm:$0xff]
        %v601 = vsel %vm522, %v516, 0
        %603 = vmatprep.subr.mxu0 0.0
        %604 = vmatpush1.msra.mxu0 %v596
        %605 = vmatprep.subr.mxu0 0.0
        %606 = vmatpush1.msra.mxu0 %v597
        %607 = vmatprep.subr.mxu0 0.0
        %608 = vmatpush1.msra.mxu0 %v598
        %609 = vmatprep.subr.mxu0 0.0
        %610 = vmatpush1.msra.mxu0 %v599
        %611 = vmatprep.subr.mxu0 0.0
        %612 = vmatpush1.msra.mxu0 0.0
        %613 = vmatprep.subr.mxu0 0.0
        %614 = vmatpush1.msra.mxu0 0.0
        %615 = vmatprep.subr.mxu0 0.0
        %616 = vmatpush1.msra.mxu0 0.0
        %617 = vmatprep.subr.mxu0 0.0
        %618 = vmatpush1.msra.mxu0 0.0
        %619 = vmatprep.subr.mxu0 0.0
        %620 = vmatpush1.msra.mxu0 0.0
        %621 = vmatprep.subr.mxu0 0.0
        %622 = vmatpush1.msra.mxu0 0.0
        %623 = vmatprep.subr.mxu0 0.0
        %624 = vmatpush1.msra.mxu0 0.0
        %625 = vmatprep.subr.mxu0 0.0
        %626 = vmatpush1.msra.mxu0 0.0
        %627 = vmatprep.subr.mxu0 0.0
        %628 = vmatpush1.msra.mxu0 0.0
        %629 = vmatprep.subr.mxu0 0.0
        %630 = vmatpush1.msra.mxu0 0.0
        %631 = vmatprep.subr.mxu0 0.0
        %632 = vmatpush1.msra.mxu0 0.0
        %633 = vmatprep.subr.mxu0 0.0
        %634 = vmatpush1.msra.mxu0 0.0
        %635 = vmatprep.subr.mxu0 0.0
        %636 = vmatpush1.msra.mxu0 0.0
        %637 = vmatprep.subr.mxu0 0.0
        %638 = vmatpush1.msra.mxu0 0.0
        %639 = vmatprep.subr.mxu0 0.0
        %640 = vmatpush1.msra.mxu0 0.0
        %641 = vmatprep.subr.mxu0 0.0
        %642 = vmatpush1.msra.mxu0 0.0
        %643 = vmatprep.subr.mxu0 0.0
        %644 = vmatpush1.msra.mxu0 0.0
        %645 = vmatprep.subr.mxu0 0.0
        %646 = vmatpush1.msra.mxu0 0.0
        %647 = vmatprep.subr.mxu0 0.0
        %648 = vmatpush1.msra.mxu0 0.0
        %649 = vmatprep.subr.mxu0 0.0
        %650 = vmatpush1.msra.mxu0 0.0
        %651 = vmatprep.subr.mxu0 0.0
        %652 = vmatpush1.msra.mxu0 0.0
        %653 = vmatprep.subr.mxu0 0.0
        %654 = vmatpush1.msra.mxu0 0.0
        %655 = vmatprep.subr.mxu0 0.0
        %656 = vmatpush1.msra.mxu0 0.0
        %657 = vmatprep.subr.mxu0 0.0
        %658 = vmatpush1.msra.mxu0 0.0
        %659 = vmatprep.subr.mxu0 0.0
        %660 = vmatpush1.msra.mxu0 0.0
        %661 = vmatprep.subr.mxu0 0.0
        %662 = vmatpush1.msra.mxu0 0.0
        %663 = vmatprep.subr.mxu0 0.0
        %664 = vmatpush1.msra.mxu0 0.0
        %665 = vmatprep.subr.mxu0 0.0
        %666 = vmatpush1.msra.mxu0 0.0
        %667 = vmatprep.mubr.f32.mxu0 0.0
        %668 = vmatmul.mubr.f32.gmra.mrb[0].mxu0 %v601
        %v669 = vpop.f32.mrb[0].mxu0
        %v670 = vadd.f32 0.0, %v669
        %v671 = vpop.f32.mrb[0].mxu0
        %672 = vdwg.mxu0
        %v673 = vld [vmem:[#allocation11] sm:$0xff]
        %v674 = vld [vmem:[#allocation11 + $0x8] sm:$0xff]
        %v675 = vld [vmem:[#allocation11 + $0x10] sm:$0xff]
        %v676 = vld [vmem:[#allocation11 + $0x18] sm:$0xff]
        %v678 = vsel %vm522, %v517, 0
        %680 = vmatprep.subr.mxu0 0.0
        %681 = vmatpush1.msra.mxu0 %v673
        %682 = vmatprep.subr.mxu0 0.0
        %683 = vmatpush1.msra.mxu0 %v674
        %684 = vmatprep.subr.mxu0 0.0
        %685 = vmatpush1.msra.mxu0 %v675
        %686 = vmatprep.subr.mxu0 0.0
        %687 = vmatpush1.msra.mxu0 %v676
        %688 = vmatprep.subr.mxu0 0.0
        %689 = vmatpush1.msra.mxu0 0.0
        %690 = vmatprep.subr.mxu0 0.0
        %691 = vmatpush1.msra.mxu0 0.0
        %692 = vmatprep.subr.mxu0 0.0
        %693 = vmatpush1.msra.mxu0 0.0
        %694 = vmatprep.subr.mxu0 0.0
        %695 = vmatpush1.msra.mxu0 0.0
        %696 = vmatprep.subr.mxu0 0.0
        %697 = vmatpush1.msra.mxu0 0.0
        %698 = vmatprep.subr.mxu0 0.0
        %699 = vmatpush1.msra.mxu0 0.0
        %700 = vmatprep.subr.mxu0 0.0
        %701 = vmatpush1.msra.mxu0 0.0
        %702 = vmatprep.subr.mxu0 0.0
        %703 = vmatpush1.msra.mxu0 0.0
        %704 = vmatprep.subr.mxu0 0.0
        %705 = vmatpush1.msra.mxu0 0.0
        %706 = vmatprep.subr.mxu0 0.0
        %707 = vmatpush1.msra.mxu0 0.0
        %708 = vmatprep.subr.mxu0 0.0
        %709 = vmatpush1.msra.mxu0 0.0
        %710 = vmatprep.subr.mxu0 0.0
        %711 = vmatpush1.msra.mxu0 0.0
        %712 = vmatprep.subr.mxu0 0.0
        %713 = vmatpush1.msra.mxu0 0.0
        %714 = vmatprep.subr.mxu0 0.0
        %715 = vmatpush1.msra.mxu0 0.0
        %716 = vmatprep.subr.mxu0 0.0
        %717 = vmatpush1.msra.mxu0 0.0
        %718 = vmatprep.subr.mxu0 0.0
        %719 = vmatpush1.msra.mxu0 0.0
        %720 = vmatprep.subr.mxu0 0.0
        %721 = vmatpush1.msra.mxu0 0.0
        %722 = vmatprep.subr.mxu0 0.0
        %723 = vmatpush1.msra.mxu0 0.0
        %724 = vmatprep.subr.mxu0 0.0
        %725 = vmatpush1.msra.mxu0 0.0
        %726 = vmatprep.subr.mxu0 0.0
        %727 = vmatpush1.msra.mxu0 0.0
        %728 = vmatprep.subr.mxu0 0.0
        %729 = vmatpush1.msra.mxu0 0.0
        %730 = vmatprep.subr.mxu0 0.0
        %731 = vmatpush1.msra.mxu0 0.0
        %732 = vmatprep.subr.mxu0 0.0
        %733 = vmatpush1.msra.mxu0 0.0
        %734 = vmatprep.subr.mxu0 0.0
        %735 = vmatpush1.msra.mxu0 0.0
        %736 = vmatprep.subr.mxu0 0.0
        %737 = vmatpush1.msra.mxu0 0.0
        %738 = vmatprep.subr.mxu0 0.0
        %739 = vmatpush1.msra.mxu0 0.0
        %740 = vmatprep.subr.mxu0 0.0
        %741 = vmatpush1.msra.mxu0 0.0
        %742 = vmatprep.subr.mxu0 0.0
        %743 = vmatpush1.msra.mxu0 0.0
        %744 = vmatprep.mubr.f32.mxu0 0.0
        %745 = vmatmul.mubr.f32.gmra.mrb[0].mxu0 %v678
        %v746 = vpop.f32.mrb[0].mxu0
        %v747 = vadd.f32 0.0, %v746
        %v748 = vpop.f32.mrb[0].mxu0
        %749 = vdwg.mxu0
        %751 = vrot.lane.b32.xlu0 %v593, 120
        %v752 = vpop.permute.xlu0 %751
        %753 = vrot.lane.b32.xlu0 %v593, 112
        %v754 = vpop.permute.xlu0 %753
        %755 = vrot.lane.b32.xlu0 %v593, 104
        %v756 = vpop.permute.xlu0 %755
        %758 = vrot.lane.b32.xlu0 %v670, 120
        %v759 = vpop.permute.xlu0 %758
        %761 = vrot.lane.b32.xlu0 %v670, 112
        %v762 = vpop.permute.xlu0 %761
        %764 = vrot.lane.b32.xlu0 %v670, 104
        %v765 = vpop.permute.xlu0 %764
        %768 = vrot.lane.b32.xlu0 %v747, 120
        %v769 = vpop.permute.xlu0 %768
        %771 = vrot.lane.b32.xlu0 %v747, 112
        %v772 = vpop.permute.xlu0 %771
        %774 = vrot.lane.b32.xlu0 %v747, 104
        %v775 = vpop.permute.xlu0 %774
        %777 = vxpose.xlu0.b32.start [1/16] %v670, 128
        %778 = vxpose.xlu0.b32.cont [2/16] 0.0, 128
        %779 = vxpose.xlu0.b32.cont [3/16] 0.0, 128
        %780 = vxpose.xlu0.b32.cont [4/16] 0.0, 128
        %781 = vxpose.xlu0.b32.cont [5/16] 0.0, 128
        %782 = vxpose.xlu0.b32.cont [6/16] 0.0, 128
        %783 = vxpose.xlu0.b32.cont [7/16] 0.0, 128
        %784 = vxpose.xlu0.b32.cont [8/16] 0.0, 128
        %785 = vxpose.xlu0.b32.cont [9/16] 0.0, 128
        %786 = vxpose.xlu0.b32.cont [10/16] 0.0, 128
        %787 = vxpose.xlu0.b32.cont [11/16] 0.0, 128
        %788 = vxpose.xlu0.b32.cont [12/16] 0.0, 128
        %789 = vxpose.xlu0.b32.cont [13/16] 0.0, 128
        %790 = vxpose.xlu0.b32.cont [14/16] 0.0, 128
        %791 = vxpose.xlu0.b32.cont [15/16] 0.0, 128
        %792 = vxpose.xlu0.b32.end [16/16] 0.0, 128
        %v793 = vpop.trf.xlu0
        %v794 = vpop.trf.xlu0
        %v795 = vpop.trf.xlu0
        %v796 = vpop.trf.xlu0
        %v797 = vpop.trf.xlu0
        %v798 = vpop.trf.xlu0
        %v799 = vpop.trf.xlu0
        %v800 = vpop.trf.xlu0
        %v801 = vpop.trf.xlu0
        %v802 = vpop.trf.xlu0
        %v803 = vpop.trf.xlu0
        %v804 = vpop.trf.xlu0
        %v805 = vpop.trf.xlu0
        %v806 = vpop.trf.xlu0
        %v807 = vpop.trf.xlu0
        %v808 = vpop.trf.xlu0
        %809 = vxpose.xlu0.b32.start [1/16] %v759, 128
        %810 = vxpose.xlu0.b32.cont [2/16] 0.0, 128
        %811 = vxpose.xlu0.b32.cont [3/16] 0.0, 128
        %812 = vxpose.xlu0.b32.cont [4/16] 0.0, 128
        %813 = vxpose.xlu0.b32.cont [5/16] 0.0, 128
        %814 = vxpose.xlu0.b32.cont [6/16] 0.0, 128
        %815 = vxpose.xlu0.b32.cont [7/16] 0.0, 128
        %816 = vxpose.xlu0.b32.cont [8/16] 0.0, 128
        %817 = vxpose.xlu0.b32.cont [9/16] 0.0, 128
        %818 = vxpose.xlu0.b32.cont [10/16] 0.0, 128
        %819 = vxpose.xlu0.b32.cont [11/16] 0.0, 128
        %820 = vxpose.xlu0.b32.cont [12/16] 0.0, 128
        %821 = vxpose.xlu0.b32.cont [13/16] 0.0, 128
        %822 = vxpose.xlu0.b32.cont [14/16] 0.0, 128
        %823 = vxpose.xlu0.b32.cont [15/16] 0.0, 128
        %824 = vxpose.xlu0.b32.end [16/16] 0.0, 128
        %v825 = vpop.trf.xlu0
        %v826 = vpop.trf.xlu0
        %v827 = vpop.trf.xlu0
        %v828 = vpop.trf.xlu0
        %v829 = vpop.trf.xlu0
        %v830 = vpop.trf.xlu0
        %v831 = vpop.trf.xlu0
        %v832 = vpop.trf.xlu0
        %v833 = vpop.trf.xlu0
        %v834 = vpop.trf.xlu0
        %v835 = vpop.trf.xlu0
        %v836 = vpop.trf.xlu0
        %v837 = vpop.trf.xlu0
        %v838 = vpop.trf.xlu0
        %v839 = vpop.trf.xlu0
        %v840 = vpop.trf.xlu0
        %841 = vxpose.xlu0.b32.start [1/16] %v762, 128
        %842 = vxpose.xlu0.b32.cont [2/16] 0.0, 128
        %843 = vxpose.xlu0.b32.cont [3/16] 0.0, 128
        %844 = vxpose.xlu0.b32.cont [4/16] 0.0, 128
        %845 = vxpose.xlu0.b32.cont [5/16] 0.0, 128
        %846 = vxpose.xlu0.b32.cont [6/16] 0.0, 128
        %847 = vxpose.xlu0.b32.cont [7/16] 0.0, 128
        %848 = vxpose.xlu0.b32.cont [8/16] 0.0, 128
        %849 = vxpose.xlu0.b32.cont [9/16] 0.0, 128
        %850 = vxpose.xlu0.b32.cont [10/16] 0.0, 128
        %851 = vxpose.xlu0.b32.cont [11/16] 0.0, 128
        %852 = vxpose.xlu0.b32.cont [12/16] 0.0, 128
        %853 = vxpose.xlu0.b32.cont [13/16] 0.0, 128
        %854 = vxpose.xlu0.b32.cont [14/16] 0.0, 128
        %855 = vxpose.xlu0.b32.cont [15/16] 0.0, 128
        %856 = vxpose.xlu0.b32.end [16/16] 0.0, 128
        %v857 = vpop.trf.xlu0
        %v858 = vpop.trf.xlu0
        %v859 = vpop.trf.xlu0
        %v860 = vpop.trf.xlu0
        %v861 = vpop.trf.xlu0
        %v862 = vpop.trf.xlu0
        %v863 = vpop.trf.xlu0
        %v864 = vpop.trf.xlu0
        %v865 = vpop.trf.xlu0
        %v866 = vpop.trf.xlu0
        %v867 = vpop.trf.xlu0
        %v868 = vpop.trf.xlu0
        %v869 = vpop.trf.xlu0
        %v870 = vpop.trf.xlu0
        %v871 = vpop.trf.xlu0
        %v872 = vpop.trf.xlu0
        %873 = vxpose.xlu0.b32.start [1/16] %v765, 128
        %874 = vxpose.xlu0.b32.cont [2/16] 0.0, 128
        %875 = vxpose.xlu0.b32.cont [3/16] 0.0, 128
        %876 = vxpose.xlu0.b32.cont [4/16] 0.0, 128
        %877 = vxpose.xlu0.b32.cont [5/16] 0.0, 128
        %878 = vxpose.xlu0.b32.cont [6/16] 0.0, 128
        %879 = vxpose.xlu0.b32.cont [7/16] 0.0, 128
        %880 = vxpose.xlu0.b32.cont [8/16] 0.0, 128
        %881 = vxpose.xlu0.b32.cont [9/16] 0.0, 128
        %882 = vxpose.xlu0.b32.cont [10/16] 0.0, 128
        %883 = vxpose.xlu0.b32.cont [11/16] 0.0, 128
        %884 = vxpose.xlu0.b32.cont [12/16] 0.0, 128
        %885 = vxpose.xlu0.b32.cont [13/16] 0.0, 128
        %886 = vxpose.xlu0.b32.cont [14/16] 0.0, 128
        %887 = vxpose.xlu0.b32.cont [15/16] 0.0, 128
        %888 = vxpose.xlu0.b32.end [16/16] 0.0, 128
        %v889 = vpop.trf.xlu0
        %v890 = vpop.trf.xlu0
        %v891 = vpop.trf.xlu0
        %v892 = vpop.trf.xlu0
        %v893 = vpop.trf.xlu0
        %v894 = vpop.trf.xlu0
        %v895 = vpop.trf.xlu0
        %v896 = vpop.trf.xlu0
        %v897 = vpop.trf.xlu0
        %v898 = vpop.trf.xlu0
        %v899 = vpop.trf.xlu0
        %v900 = vpop.trf.xlu0
        %v901 = vpop.trf.xlu0
        %v902 = vpop.trf.xlu0
        %v903 = vpop.trf.xlu0
        %v904 = vpop.trf.xlu0
        %vm905 = vcmask 64512
        %v906 = vsel %vm905, %v593, 0
        %908 = vmatprep.subr.mxu0 0.0
        %909 = vmatpush1.msra.mxu0 %v793
        %910 = vmatprep.subr.mxu0 0.0
        %911 = vmatpush1.msra.mxu0 0.0
        %912 = vmatprep.subr.mxu0 0.0
        %913 = vmatpush1.msra.mxu0 0.0
        %914 = vmatprep.subr.mxu0 0.0
        %915 = vmatpush1.msra.mxu0 0.0
        %916 = vmatprep.subr.mxu0 0.0
        %917 = vmatpush1.msra.mxu0 0.0
        %918 = vmatprep.subr.mxu0 0.0
        %919 = vmatpush1.msra.mxu0 0.0
        %920 = vmatprep.subr.mxu0 0.0
        %921 = vmatpush1.msra.mxu0 0.0
        %922 = vmatprep.subr.mxu0 0.0
        %923 = vmatpush1.msra.mxu0 0.0
        %924 = vmatprep.subr.mxu0 0.0
        %925 = vmatpush1.msra.mxu0 0.0
        %926 = vmatprep.subr.mxu0 0.0
        %927 = vmatpush1.msra.mxu0 0.0
        %928 = vmatprep.subr.mxu0 0.0
        %929 = vmatpush1.msra.mxu0 0.0
        %930 = vmatprep.subr.mxu0 0.0
        %931 = vmatpush1.msra.mxu0 0.0
        %932 = vmatprep.subr.mxu0 0.0
        %933 = vmatpush1.msra.mxu0 0.0
        %934 = vmatprep.subr.mxu0 0.0
        %935 = vmatpush1.msra.mxu0 0.0
        %936 = vmatprep.subr.mxu0 0.0
        %937 = vmatpush1.msra.mxu0 0.0
        %938 = vmatprep.subr.mxu0 0.0
        %939 = vmatpush1.msra.mxu0 0.0
        %940 = vmatprep.subr.mxu0 0.0
        %941 = vmatpush1.msra.mxu0 0.0
        %942 = vmatprep.subr.mxu0 0.0
        %943 = vmatpush1.msra.mxu0 0.0
        %944 = vmatprep.subr.mxu0 0.0
        %945 = vmatpush1.msra.mxu0 0.0
        %946 = vmatprep.subr.mxu0 0.0
        %947 = vmatpush1.msra.mxu0 0.0
        %948 = vmatprep.subr.mxu0 0.0
        %949 = vmatpush1.msra.mxu0 0.0
        %950 = vmatprep.subr.mxu0 0.0
        %951 = vmatpush1.msra.mxu0 0.0
        %952 = vmatprep.subr.mxu0 0.0
        %953 = vmatpush1.msra.mxu0 0.0
        %954 = vmatprep.subr.mxu0 0.0
        %955 = vmatpush1.msra.mxu0 0.0
        %956 = vmatprep.subr.mxu0 0.0
        %957 = vmatpush1.msra.mxu0 0.0
        %958 = vmatprep.subr.mxu0 0.0
        %959 = vmatpush1.msra.mxu0 0.0
        %960 = vmatprep.subr.mxu0 0.0
        %961 = vmatpush1.msra.mxu0 0.0
        %962 = vmatprep.subr.mxu0 0.0
        %963 = vmatpush1.msra.mxu0 0.0
        %964 = vmatprep.subr.mxu0 0.0
        %965 = vmatpush1.msra.mxu0 0.0
        %966 = vmatprep.subr.mxu0 0.0
        %967 = vmatpush1.msra.mxu0 0.0
        %968 = vmatprep.subr.mxu0 0.0
        %969 = vmatpush1.msra.mxu0 0.0
        %970 = vmatprep.subr.mxu0 0.0
        %971 = vmatpush1.msra.mxu0 0.0
        %972 = vmatprep.mubr.f32.mxu0 0.0
        %973 = vmatmul.mubr.f32.gmra.mrb[0].mxu0 %v906
        %v974 = vpop.f32.mrb[0].mxu0
        %v975 = vadd.f32 0.0, %v974
        %v976 = vpop.f32.mrb[0].mxu0
        %977 = vdwg.mxu0
        %v978 = vsel %vm905, %v752, 0
        %980 = vmatprep.subr.mxu0 0.0
        %981 = vmatpush1.msra.mxu0 %v825
        %982 = vmatprep.subr.mxu0 0.0
        %983 = vmatpush1.msra.mxu0 0.0
        %984 = vmatprep.subr.mxu0 0.0
        %985 = vmatpush1.msra.mxu0 0.0
        %986 = vmatprep.subr.mxu0 0.0
        %987 = vmatpush1.msra.mxu0 0.0
        %988 = vmatprep.subr.mxu0 0.0
        %989 = vmatpush1.msra.mxu0 0.0
        %990 = vmatprep.subr.mxu0 0.0
        %991 = vmatpush1.msra.mxu0 0.0
        %992 = vmatprep.subr.mxu0 0.0
        %993 = vmatpush1.msra.mxu0 0.0
        %994 = vmatprep.subr.mxu0 0.0
        %995 = vmatpush1.msra.mxu0 0.0
        %996 = vmatprep.subr.mxu0 0.0
        %997 = vmatpush1.msra.mxu0 0.0
        %998 = vmatprep.subr.mxu0 0.0
        %999 = vmatpush1.msra.mxu0 0.0
        %1000 = vmatprep.subr.mxu0 0.0
        %1001 = vmatpush1.msra.mxu0 0.0
        %1002 = vmatprep.subr.mxu0 0.0
        %1003 = vmatpush1.msra.mxu0 0.0
        %1004 = vmatprep.subr.mxu0 0.0
        %1005 = vmatpush1.msra.mxu0 0.0
        %1006 = vmatprep.subr.mxu0 0.0
        %1007 = vmatpush1.msra.mxu0 0.0
        %1008 = vmatprep.subr.mxu0 0.0
        %1009 = vmatpush1.msra.mxu0 0.0
        %1010 = vmatprep.subr.mxu0 0.0
        %1011 = vmatpush1.msra.mxu0 0.0
        %1012 = vmatprep.subr.mxu0 0.0
        %1013 = vmatpush1.msra.mxu0 0.0
        %1014 = vmatprep.subr.mxu0 0.0
        %1015 = vmatpush1.msra.mxu0 0.0
        %1016 = vmatprep.subr.mxu0 0.0
        %1017 = vmatpush1.msra.mxu0 0.0
        %1018 = vmatprep.subr.mxu0 0.0
        %1019 = vmatpush1.msra.mxu0 0.0
        %1020 = vmatprep.subr.mxu0 0.0
        %1021 = vmatpush1.msra.mxu0 0.0
        %1022 = vmatprep.subr.mxu0 0.0
        %1023 = vmatpush1.msra.mxu0 0.0
        %1024 = vmatprep.subr.mxu0 0.0
        %1025 = vmatpush1.msra.mxu0 0.0
        %1026 = vmatprep.subr.mxu0 0.0
        %1027 = vmatpush1.msra.mxu0 0.0
        %1028 = vmatprep.subr.mxu0 0.0
        %1029 = vmatpush1.msra.mxu0 0.0
        %1030 = vmatprep.subr.mxu0 0.0
        %1031 = vmatpush1.msra.mxu0 0.0
        %1032 = vmatprep.subr.mxu0 0.0
        %1033 = vmatpush1.msra.mxu0 0.0
        %1034 = vmatprep.subr.mxu0 0.0
        %1035 = vmatpush1.msra.mxu0 0.0
        %1036 = vmatprep.subr.mxu0 0.0
        %1037 = vmatpush1.msra.mxu0 0.0
        %1038 = vmatprep.subr.mxu0 0.0
        %1039 = vmatpush1.msra.mxu0 0.0
        %1040 = vmatprep.subr.mxu0 0.0
        %1041 = vmatpush1.msra.mxu0 0.0
        %1042 = vmatprep.subr.mxu0 0.0
        %1043 = vmatpush1.msra.mxu0 0.0
        %1044 = vmatprep.mubr.f32.mxu0 0.0
        %1045 = vmatmul.mubr.f32.gmra.mrb[0].mxu0 %v978
        %v1046 = vpop.f32.mrb[0].mxu0
        %v1047 = vadd.f32 0.0, %v1046
        %v1048 = vpop.f32.mrb[0].mxu0
        %1049 = vdwg.mxu0
        %v1050 = vsel %vm905, %v754, 0
        %1052 = vmatprep.subr.mxu0 0.0
        %1053 = vmatpush1.msra.mxu0 %v857
        %1054 = vmatprep.subr.mxu0 0.0
        %1055 = vmatpush1.msra.mxu0 0.0
        %1056 = vmatprep.subr.mxu0 0.0
        %1057 = vmatpush1.msra.mxu0 0.0
        %1058 = vmatprep.subr.mxu0 0.0
        %1059 = vmatpush1.msra.mxu0 0.0
        %1060 = vmatprep.subr.mxu0 0.0
        %1061 = vmatpush1.msra.mxu0 0.0
        %1062 = vmatprep.subr.mxu0 0.0
        %1063 = vmatpush1.msra.mxu0 0.0
        %1064 = vmatprep.subr.mxu0 0.0
        %1065 = vmatpush1.msra.mxu0 0.0
        %1066 = vmatprep.subr.mxu0 0.0
        %1067 = vmatpush1.msra.mxu0 0.0
        %1068 = vmatprep.subr.mxu0 0.0
        %1069 = vmatpush1.msra.mxu0 0.0
        %1070 = vmatprep.subr.mxu0 0.0
        %1071 = vmatpush1.msra.mxu0 0.0
        %1072 = vmatprep.subr.mxu0 0.0
        %1073 = vmatpush1.msra.mxu0 0.0
        %1074 = vmatprep.subr.mxu0 0.0
        %1075 = vmatpush1.msra.mxu0 0.0
        %1076 = vmatprep.subr.mxu0 0.0
        %1077 = vmatpush1.msra.mxu0 0.0
        %1078 = vmatprep.subr.mxu0 0.0
        %1079 = vmatpush1.msra.mxu0 0.0
        %1080 = vmatprep.subr.mxu0 0.0
        %1081 = vmatpush1.msra.mxu0 0.0
        %1082 = vmatprep.subr.mxu0 0.0
        %1083 = vmatpush1.msra.mxu0 0.0
        %1084 = vmatprep.subr.mxu0 0.0
        %1085 = vmatpush1.msra.mxu0 0.0
        %1086 = vmatprep.subr.mxu0 0.0
        %1087 = vmatpush1.msra.mxu0 0.0
        %1088 = vmatprep.subr.mxu0 0.0
        %1089 = vmatpush1.msra.mxu0 0.0
        %1090 = vmatprep.subr.mxu0 0.0
        %1091 = vmatpush1.msra.mxu0 0.0
        %1092 = vmatprep.subr.mxu0 0.0
        %1093 = vmatpush1.msra.mxu0 0.0
        %1094 = vmatprep.subr.mxu0 0.0
        %1095 = vmatpush1.msra.mxu0 0.0
        %1096 = vmatprep.subr.mxu0 0.0
        %1097 = vmatpush1.msra.mxu0 0.0
        %1098 = vmatprep.subr.mxu0 0.0
        %1099 = vmatpush1.msra.mxu0 0.0
        %1100 = vmatprep.subr.mxu0 0.0
        %1101 = vmatpush1.msra.mxu0 0.0
        %1102 = vmatprep.subr.mxu0 0.0
        %1103 = vmatpush1.msra.mxu0 0.0
        %1104 = vmatprep.subr.mxu0 0.0
        %1105 = vmatpush1.msra.mxu0 0.0
        %1106 = vmatprep.subr.mxu0 0.0
        %1107 = vmatpush1.msra.mxu0 0.0
        %1108 = vmatprep.subr.mxu0 0.0
        %1109 = vmatpush1.msra.mxu0 0.0
        %1110 = vmatprep.subr.mxu0 0.0
        %1111 = vmatpush1.msra.mxu0 0.0
        %1112 = vmatprep.subr.mxu0 0.0
        %1113 = vmatpush1.msra.mxu0 0.0
        %1114 = vmatprep.subr.mxu0 0.0
        %1115 = vmatpush1.msra.mxu0 0.0
        %1116 = vmatprep.mubr.f32.mxu0 0.0
        %1117 = vmatmul.mubr.f32.gmra.mrb[0].mxu0 %v1050
        %v1118 = vpop.f32.mrb[0].mxu0
        %v1119 = vadd.f32 0.0, %v1118
        %v1120 = vpop.f32.mrb[0].mxu0
        %1121 = vdwg.mxu0
        %v1122 = vsel %vm905, %v756, 0
        %1124 = vmatprep.subr.mxu0 0.0
        %1125 = vmatpush1.msra.mxu0 %v889
        %1126 = vmatprep.subr.mxu0 0.0
        %1127 = vmatpush1.msra.mxu0 0.0
        %1128 = vmatprep.subr.mxu0 0.0
        %1129 = vmatpush1.msra.mxu0 0.0
        %1130 = vmatprep.subr.mxu0 0.0
        %1131 = vmatpush1.msra.mxu0 0.0
        %1132 = vmatprep.subr.mxu0 0.0
        %1133 = vmatpush1.msra.mxu0 0.0
        %1134 = vmatprep.subr.mxu0 0.0
        %1135 = vmatpush1.msra.mxu0 0.0
        %1136 = vmatprep.subr.mxu0 0.0
        %1137 = vmatpush1.msra.mxu0 0.0
        %1138 = vmatprep.subr.mxu0 0.0
        %1139 = vmatpush1.msra.mxu0 0.0
        %1140 = vmatprep.subr.mxu0 0.0
        %1141 = vmatpush1.msra.mxu0 0.0
        %1142 = vmatprep.subr.mxu0 0.0
        %1143 = vmatpush1.msra.mxu0 0.0
        %1144 = vmatprep.subr.mxu0 0.0
        %1145 = vmatpush1.msra.mxu0 0.0
        %1146 = vmatprep.subr.mxu0 0.0
        %1147 = vmatpush1.msra.mxu0 0.0
        %1148 = vmatprep.subr.mxu0 0.0
        %1149 = vmatpush1.msra.mxu0 0.0
        %1150 = vmatprep.subr.mxu0 0.0
        %1151 = vmatpush1.msra.mxu0 0.0
        %1152 = vmatprep.subr.mxu0 0.0
        %1153 = vmatpush1.msra.mxu0 0.0
        %1154 = vmatprep.subr.mxu0 0.0
        %1155 = vmatpush1.msra.mxu0 0.0
        %1156 = vmatprep.subr.mxu0 0.0
        %1157 = vmatpush1.msra.mxu0 0.0
        %1158 = vmatprep.subr.mxu0 0.0
        %1159 = vmatpush1.msra.mxu0 0.0
        %1160 = vmatprep.subr.mxu0 0.0
        %1161 = vmatpush1.msra.mxu0 0.0
        %1162 = vmatprep.subr.mxu0 0.0
        %1163 = vmatpush1.msra.mxu0 0.0
        %1164 = vmatprep.subr.mxu0 0.0
        %1165 = vmatpush1.msra.mxu0 0.0
        %1166 = vmatprep.subr.mxu0 0.0
        %1167 = vmatpush1.msra.mxu0 0.0
        %1168 = vmatprep.subr.mxu0 0.0
        %1169 = vmatpush1.msra.mxu0 0.0
        %1170 = vmatprep.subr.mxu0 0.0
        %1171 = vmatpush1.msra.mxu0 0.0
        %1172 = vmatprep.subr.mxu0 0.0
        %1173 = vmatpush1.msra.mxu0 0.0
        %1174 = vmatprep.subr.mxu0 0.0
        %1175 = vmatpush1.msra.mxu0 0.0
        %1176 = vmatprep.subr.mxu0 0.0
        %1177 = vmatpush1.msra.mxu0 0.0
        %1178 = vmatprep.subr.mxu0 0.0
        %1179 = vmatpush1.msra.mxu0 0.0
        %1180 = vmatprep.subr.mxu0 0.0
        %1181 = vmatpush1.msra.mxu0 0.0
        %1182 = vmatprep.subr.mxu0 0.0
        %1183 = vmatpush1.msra.mxu0 0.0
        %1184 = vmatprep.subr.mxu0 0.0
        %1185 = vmatpush1.msra.mxu0 0.0
        %1186 = vmatprep.subr.mxu0 0.0
        %1187 = vmatpush1.msra.mxu0 0.0
        %1188 = vmatprep.mubr.f32.mxu0 0.0
        %1189 = vmatmul.mubr.f32.gmra.mrb[0].mxu0 %v1122
        %v1190 = vpop.f32.mrb[0].mxu0
        %v1191 = vadd.f32 0.0, %v1190
        %v1192 = vpop.f32.mrb[0].mxu0
        %1193 = vdwg.mxu0
        %v1194 = vsel %vm905, %v975, -inf
        %1195 = vmax.xlane.f32.xlu0 %v1194
        %v1196 = vpop.xlane.xlu0 %1195
        %v1197 = vsel %vm905, %v1047, -inf
        %1198 = vmax.xlane.f32.xlu0 %v1197
        %v1199 = vpop.xlane.xlu0 %1198
        %v1200 = vsel %vm905, %v1119, -inf
        %1201 = vmax.xlane.f32.xlu0 %v1200
        %v1202 = vpop.xlane.xlu0 %1201
        %v1203 = vsel %vm905, %v1191, -inf
        %1204 = vmax.xlane.f32.xlu0 %v1203
        %v1205 = vpop.xlane.xlu0 %1204
        %v1206 = vsub.f32 %v975, %v1196
        %v1207 = vsub.f32 %v1047, %v1199
        %v1208 = vsub.f32 %v1119, %v1202
        %v1209 = vsub.f32 %v1191, %v1205
        %v1210 = vmul.f32 %v1206, 1.442695
        %v1211 = vpow.pop %v1210
        %v1212 = vmul.f32 %v1207, 1.442695
        %v1213 = vpow.pop %v1212
        %v1214 = vmul.f32 %v1208, 1.442695
        %v1215 = vpow.pop %v1214
        %v1216 = vmul.f32 %v1209, 1.442695
        %v1217 = vpow.pop %v1216
        %v1218 = vsel %vm905, %v1211, 0.0
        %1219 = vadd.xlane.f32.xlu0 %v1218
        %v1220 = vpop.xlane.xlu0 %1219
        %v1221 = vsel %vm905, %v1213, 0.0
        %1222 = vadd.xlane.f32.xlu0 %v1221
        %v1223 = vpop.xlane.xlu0 %1222
        %v1224 = vsel %vm905, %v1215, 0.0
        %1225 = vadd.xlane.f32.xlu0 %v1224
        %v1226 = vpop.xlane.xlu0 %1225
        %v1227 = vsel %vm905, %v1217, 0.0
        %1228 = vadd.xlane.f32.xlu0 %v1227
        %v1229 = vpop.xlane.xlu0 %1228
        %v1230 = vrcp.pop %v1220
        %v1231 = vrcp.pop %v1223
        %v1232 = vrcp.pop %v1226
        %v1233 = vrcp.pop %v1229
        %v1234 = vmul.f32 %v1211, %v1230
        %v1235 = vmul.f32 %v1213, %v1231
        %v1236 = vmul.f32 %v1215, %v1232
        %v1237 = vmul.f32 %v1217, %v1233
        %1238 = vst.msk [vmem:[%s514] sm:$0xff] %vm905, %v1234
        %1239 = vst.msk [vmem:[%s514 + $0x8] sm:$0xff] %vm905, %v1235
        %1240 = vst.msk [vmem:[%s514 + $0x10] sm:$0xff] %vm905, %v1236
        %1241 = vst.msk [vmem:[%s514 + $0x18] sm:$0xff] %vm905, %v1237
        %1242 = vxpose.xlu0.b32.start [1/16] %v747, 128
        %1243 = vxpose.xlu0.b32.cont [2/16] 0.0, 128
        %1244 = vxpose.xlu0.b32.cont [3/16] 0.0, 128
        %1245 = vxpose.xlu0.b32.cont [4/16] 0.0, 128
        %1246 = vxpose.xlu0.b32.cont [5/16] 0.0, 128
        %1247 = vxpose.xlu0.b32.cont [6/16] 0.0, 128
        %1248 = vxpose.xlu0.b32.cont [7/16] 0.0, 128
        %1249 = vxpose.xlu0.b32.cont [8/16] 0.0, 128
        %1250 = vxpose.xlu0.b32.cont [9/16] 0.0, 128
        %1251 = vxpose.xlu0.b32.cont [10/16] 0.0, 128
        %1252 = vxpose.xlu0.b32.cont [11/16] 0.0, 128
        %1253 = vxpose.xlu0.b32.cont [12/16] 0.0, 128
        %1254 = vxpose.xlu0.b32.cont [13/16] 0.0, 128
        %1255 = vxpose.xlu0.b32.cont [14/16] 0.0, 128
        %1256 = vxpose.xlu0.b32.cont [15/16] 0.0, 128
        %1257 = vxpose.xlu0.b32.end [16/16] 0.0, 128
        %v1258 = vpop.trf.xlu0
        %v1259 = vpop.trf.xlu0
        %v1260 = vpop.trf.xlu0
        %v1261 = vpop.trf.xlu0
        %v1262 = vpop.trf.xlu0
        %v1263 = vpop.trf.xlu0
        %v1264 = vpop.trf.xlu0
        %v1265 = vpop.trf.xlu0
        %v1266 = vpop.trf.xlu0
        %v1267 = vpop.trf.xlu0
        %v1268 = vpop.trf.xlu0
        %v1269 = vpop.trf.xlu0
        %v1270 = vpop.trf.xlu0
        %v1271 = vpop.trf.xlu0
        %v1272 = vpop.trf.xlu0
        %v1273 = vpop.trf.xlu0
        %1274 = vxpose.xlu0.b32.start [1/16] %v769, 128
        %1275 = vxpose.xlu0.b32.cont [2/16] 0.0, 128
        %1276 = vxpose.xlu0.b32.cont [3/16] 0.0, 128
        %1277 = vxpose.xlu0.b32.cont [4/16] 0.0, 128
        %1278 = vxpose.xlu0.b32.cont [5/16] 0.0, 128
        %1279 = vxpose.xlu0.b32.cont [6/16] 0.0, 128
        %1280 = vxpose.xlu0.b32.cont [7/16] 0.0, 128
        %1281 = vxpose.xlu0.b32.cont [8/16] 0.0, 128
        %1282 = vxpose.xlu0.b32.cont [9/16] 0.0, 128
        %1283 = vxpose.xlu0.b32.cont [10/16] 0.0, 128
        %1284 = vxpose.xlu0.b32.cont [11/16] 0.0, 128
        %1285 = vxpose.xlu0.b32.cont [12/16] 0.0, 128
        %1286 = vxpose.xlu0.b32.cont [13/16] 0.0, 128
        %1287 = vxpose.xlu0.b32.cont [14/16] 0.0, 128
        %1288 = vxpose.xlu0.b32.cont [15/16] 0.0, 128
        %1289 = vxpose.xlu0.b32.end [16/16] 0.0, 128
        %v1290 = vpop.trf.xlu0
        %v1291 = vpop.trf.xlu0
        %v1292 = vpop.trf.xlu0
        %v1293 = vpop.trf.xlu0
        %v1294 = vpop.trf.xlu0
        %v1295 = vpop.trf.xlu0
        %v1296 = vpop.trf.xlu0
        %v1297 = vpop.trf.xlu0
        %v1298 = vpop.trf.xlu0
        %v1299 = vpop.trf.xlu0
        %v1300 = vpop.trf.xlu0
        %v1301 = vpop.trf.xlu0
        %v1302 = vpop.trf.xlu0
        %v1303 = vpop.trf.xlu0
        %v1304 = vpop.trf.xlu0
        %v1305 = vpop.trf.xlu0
        %1306 = vxpose.xlu0.b32.start [1/16] %v772, 128
        %1307 = vxpose.xlu0.b32.cont [2/16] 0.0, 128
        %1308 = vxpose.xlu0.b32.cont [3/16] 0.0, 128
        %1309 = vxpose.xlu0.b32.cont [4/16] 0.0, 128
        %1310 = vxpose.xlu0.b32.cont [5/16] 0.0, 128
        %1311 = vxpose.xlu0.b32.cont [6/16] 0.0, 128
        %1312 = vxpose.xlu0.b32.cont [7/16] 0.0, 128
        %1313 = vxpose.xlu0.b32.cont [8/16] 0.0, 128
        %1314 = vxpose.xlu0.b32.cont [9/16] 0.0, 128
        %1315 = vxpose.xlu0.b32.cont [10/16] 0.0, 128
        %1316 = vxpose.xlu0.b32.cont [11/16] 0.0, 128
        %1317 = vxpose.xlu0.b32.cont [12/16] 0.0, 128
        %1318 = vxpose.xlu0.b32.cont [13/16] 0.0, 128
        %1319 = vxpose.xlu0.b32.cont [14/16] 0.0, 128
        %1320 = vxpose.xlu0.b32.cont [15/16] 0.0, 128
        %1321 = vxpose.xlu0.b32.end [16/16] 0.0, 128
        %v1322 = vpop.trf.xlu0
        %v1323 = vpop.trf.xlu0
        %v1324 = vpop.trf.xlu0
        %v1325 = vpop.trf.xlu0
        %v1326 = vpop.trf.xlu0
        %v1327 = vpop.trf.xlu0
        %v1328 = vpop.trf.xlu0
        %v1329 = vpop.trf.xlu0
        %v1330 = vpop.trf.xlu0
        %v1331 = vpop.trf.xlu0
        %v1332 = vpop.trf.xlu0
        %v1333 = vpop.trf.xlu0
        %v1334 = vpop.trf.xlu0
        %v1335 = vpop.trf.xlu0
        %v1336 = vpop.trf.xlu0
        %v1337 = vpop.trf.xlu0
        %1338 = vxpose.xlu0.b32.start [1/16] %v775, 128
        %1339 = vxpose.xlu0.b32.cont [2/16] 0.0, 128
        %1340 = vxpose.xlu0.b32.cont [3/16] 0.0, 128
        %1341 = vxpose.xlu0.b32.cont [4/16] 0.0, 128
        %1342 = vxpose.xlu0.b32.cont [5/16] 0.0, 128
        %1343 = vxpose.xlu0.b32.cont [6/16] 0.0, 128
        %1344 = vxpose.xlu0.b32.cont [7/16] 0.0, 128
        %1345 = vxpose.xlu0.b32.cont [8/16] 0.0, 128
        %1346 = vxpose.xlu0.b32.cont [9/16] 0.0, 128
        %1347 = vxpose.xlu0.b32.cont [10/16] 0.0, 128
        %1348 = vxpose.xlu0.b32.cont [11/16] 0.0, 128
        %1349 = vxpose.xlu0.b32.cont [12/16] 0.0, 128
        %1350 = vxpose.xlu0.b32.cont [13/16] 0.0, 128
        %1351 = vxpose.xlu0.b32.cont [14/16] 0.0, 128
        %1352 = vxpose.xlu0.b32.cont [15/16] 0.0, 128
        %1353 = vxpose.xlu0.b32.end [16/16] 0.0, 128
        %v1354 = vpop.trf.xlu0
        %v1355 = vpop.trf.xlu0
        %v1356 = vpop.trf.xlu0
        %v1357 = vpop.trf.xlu0
        %v1358 = vpop.trf.xlu0
        %v1359 = vpop.trf.xlu0
        %v1360 = vpop.trf.xlu0
        %v1361 = vpop.trf.xlu0
        %v1362 = vpop.trf.xlu0
        %v1363 = vpop.trf.xlu0
        %v1364 = vpop.trf.xlu0
        %v1365 = vpop.trf.xlu0
        %v1366 = vpop.trf.xlu0
        %v1367 = vpop.trf.xlu0
        %v1368 = vpop.trf.xlu0
        %v1369 = vpop.trf.xlu0
        %v1371 = vsel %vm905, %v1258, 0
        %v1374 = vsel %vm905, %v1234, 0
        %1376 = vmatprep.subr.mxu0 0.0
        %1377 = vmatpush1.xpose.msra.mxu0 %v1374
        %1378 = vmatprep.subr.mxu0 0.0
        %1379 = vmatpush1.xpose.msra.mxu0 0.0
        %1380 = vmatprep.subr.mxu0 0.0
        %1381 = vmatpush1.xpose.msra.mxu0 0.0
        %1382 = vmatprep.subr.mxu0 0.0
        %1383 = vmatpush1.xpose.msra.mxu0 0.0
        %1384 = vmatprep.subr.mxu0 0.0
        %1385 = vmatpush1.xpose.msra.mxu0 0.0
        %1386 = vmatprep.subr.mxu0 0.0
        %1387 = vmatpush1.xpose.msra.mxu0 0.0
        %1388 = vmatprep.subr.mxu0 0.0
        %1389 = vmatpush1.xpose.msra.mxu0 0.0
        %1390 = vmatprep.subr.mxu0 0.0
        %1391 = vmatpush1.xpose.msra.mxu0 0.0
        %1392 = vmatprep.subr.mxu0 0.0
        %1393 = vmatpush1.xpose.msra.mxu0 0.0
        %1394 = vmatprep.subr.mxu0 0.0
        %1395 = vmatpush1.xpose.msra.mxu0 0.0
        %1396 = vmatprep.subr.mxu0 0.0
        %1397 = vmatpush1.xpose.msra.mxu0 0.0
        %1398 = vmatprep.subr.mxu0 0.0
        %1399 = vmatpush1.xpose.msra.mxu0 0.0
        %1400 = vmatprep.subr.mxu0 0.0
        %1401 = vmatpush1.xpose.msra.mxu0 0.0
        %1402 = vmatprep.subr.mxu0 0.0
        %1403 = vmatpush1.xpose.msra.mxu0 0.0
        %1404 = vmatprep.subr.mxu0 0.0
        %1405 = vmatpush1.xpose.msra.mxu0 0.0
        %1406 = vmatprep.subr.mxu0 0.0
        %1407 = vmatpush1.xpose.msra.mxu0 0.0
        %1408 = vmatprep.subr.mxu0 0.0
        %1409 = vmatpush1.xpose.msra.mxu0 0.0
        %1410 = vmatprep.subr.mxu0 0.0
        %1411 = vmatpush1.xpose.msra.mxu0 0.0
        %1412 = vmatprep.subr.mxu0 0.0
        %1413 = vmatpush1.xpose.msra.mxu0 0.0
        %1414 = vmatprep.subr.mxu0 0.0
        %1415 = vmatpush1.xpose.msra.mxu0 0.0
        %1416 = vmatprep.subr.mxu0 0.0
        %1417 = vmatpush1.xpose.msra.mxu0 0.0
        %1418 = vmatprep.subr.mxu0 0.0
        %1419 = vmatpush1.xpose.msra.mxu0 0.0
        %1420 = vmatprep.subr.mxu0 0.0
        %1421 = vmatpush1.xpose.msra.mxu0 0.0
        %1422 = vmatprep.subr.mxu0 0.0
        %1423 = vmatpush1.xpose.msra.mxu0 0.0
        %1424 = vmatprep.subr.mxu0 0.0
        %1425 = vmatpush1.xpose.msra.mxu0 0.0
        %1426 = vmatprep.subr.mxu0 0.0
        %1427 = vmatpush1.xpose.msra.mxu0 0.0
        %1428 = vmatprep.subr.mxu0 0.0
        %1429 = vmatpush1.xpose.msra.mxu0 0.0
        %1430 = vmatprep.subr.mxu0 0.0
        %1431 = vmatpush1.xpose.msra.mxu0 0.0
        %1432 = vmatprep.subr.mxu0 0.0
        %1433 = vmatpush1.xpose.msra.mxu0 0.0
        %1434 = vmatprep.subr.mxu0 0.0
        %1435 = vmatpush1.xpose.msra.mxu0 0.0
        %1436 = vmatprep.subr.mxu0 0.0
        %1437 = vmatpush1.xpose.msra.mxu0 0.0
        %1438 = vmatprep.subr.mxu0 0.0
        %1439 = vmatpush1.xpose.msra.mxu0 0.0
        %1440 = vmatprep.mubr.f32.mxu0 0.0
        %1441 = vmatmul.mubr.f32.gmra.mrb[0].mxu0 %v1371
        %v1442 = vpop.f32.mrb[0].mxu0
        %v1443 = vadd.f32 0.0, %v1442
        %v1444 = vpop.f32.mrb[0].mxu0
        %1445 = vdwg.mxu0
        %v1447 = vsel %vm905, %v1290, 0
        %v1450 = vsel %vm905, %v1235, 0
        %1452 = vmatprep.subr.mxu0 0.0
        %1453 = vmatpush1.xpose.msra.mxu0 %v1450
        %1454 = vmatprep.subr.mxu0 0.0
        %1455 = vmatpush1.xpose.msra.mxu0 0.0
        %1456 = vmatprep.subr.mxu0 0.0
        %1457 = vmatpush1.xpose.msra.mxu0 0.0
        %1458 = vmatprep.subr.mxu0 0.0
        %1459 = vmatpush1.xpose.msra.mxu0 0.0
        %1460 = vmatprep.subr.mxu0 0.0
        %1461 = vmatpush1.xpose.msra.mxu0 0.0
        %1462 = vmatprep.subr.mxu0 0.0
        %1463 = vmatpush1.xpose.msra.mxu0 0.0
        %1464 = vmatprep.subr.mxu0 0.0
        %1465 = vmatpush1.xpose.msra.mxu0 0.0
        %1466 = vmatprep.subr.mxu0 0.0
        %1467 = vmatpush1.xpose.msra.mxu0 0.0
        %1468 = vmatprep.subr.mxu0 0.0
        %1469 = vmatpush1.xpose.msra.mxu0 0.0
        %1470 = vmatprep.subr.mxu0 0.0
        %1471 = vmatpush1.xpose.msra.mxu0 0.0
        %1472 = vmatprep.subr.mxu0 0.0
        %1473 = vmatpush1.xpose.msra.mxu0 0.0
        %1474 = vmatprep.subr.mxu0 0.0
        %1475 = vmatpush1.xpose.msra.mxu0 0.0
        %1476 = vmatprep.subr.mxu0 0.0
        %1477 = vmatpush1.xpose.msra.mxu0 0.0
        %1478 = vmatprep.subr.mxu0 0.0
        %1479 = vmatpush1.xpose.msra.mxu0 0.0
        %1480 = vmatprep.subr.mxu0 0.0
        %1481 = vmatpush1.xpose.msra.mxu0 0.0
        %1482 = vmatprep.subr.mxu0 0.0
        %1483 = vmatpush1.xpose.msra.mxu0 0.0
        %1484 = vmatprep.subr.mxu0 0.0
        %1485 = vmatpush1.xpose.msra.mxu0 0.0
        %1486 = vmatprep.subr.mxu0 0.0
        %1487 = vmatpush1.xpose.msra.mxu0 0.0
        %1488 = vmatprep.subr.mxu0 0.0
        %1489 = vmatpush1.xpose.msra.mxu0 0.0
        %1490 = vmatprep.subr.mxu0 0.0
        %1491 = vmatpush1.xpose.msra.mxu0 0.0
        %1492 = vmatprep.subr.mxu0 0.0
        %1493 = vmatpush1.xpose.msra.mxu0 0.0
        %1494 = vmatprep.subr.mxu0 0.0
        %1495 = vmatpush1.xpose.msra.mxu0 0.0
        %1496 = vmatprep.subr.mxu0 0.0
        %1497 = vmatpush1.xpose.msra.mxu0 0.0
        %1498 = vmatprep.subr.mxu0 0.0
        %1499 = vmatpush1.xpose.msra.mxu0 0.0
        %1500 = vmatprep.subr.mxu0 0.0
        %1501 = vmatpush1.xpose.msra.mxu0 0.0
        %1502 = vmatprep.subr.mxu0 0.0
        %1503 = vmatpush1.xpose.msra.mxu0 0.0
        %1504 = vmatprep.subr.mxu0 0.0
        %1505 = vmatpush1.xpose.msra.mxu0 0.0
        %1506 = vmatprep.subr.mxu0 0.0
        %1507 = vmatpush1.xpose.msra.mxu0 0.0
        %1508 = vmatprep.subr.mxu0 0.0
        %1509 = vmatpush1.xpose.msra.mxu0 0.0
        %1510 = vmatprep.subr.mxu0 0.0
        %1511 = vmatpush1.xpose.msra.mxu0 0.0
        %1512 = vmatprep.subr.mxu0 0.0
        %1513 = vmatpush1.xpose.msra.mxu0 0.0
        %1514 = vmatprep.subr.mxu0 0.0
        %1515 = vmatpush1.xpose.msra.mxu0 0.0
        %1516 = vmatprep.mubr.f32.mxu0 0.0
        %1517 = vmatmul.mubr.f32.gmra.mrb[0].mxu0 %v1447
        %v1518 = vpop.f32.mrb[0].mxu0
        %v1519 = vadd.f32 0.0, %v1518
        %v1520 = vpop.f32.mrb[0].mxu0
        %1521 = vdwg.mxu0
        %v1523 = vsel %vm905, %v1322, 0
        %v1526 = vsel %vm905, %v1236, 0
        %1528 = vmatprep.subr.mxu0 0.0
        %1529 = vmatpush1.xpose.msra.mxu0 %v1526
        %1530 = vmatprep.subr.mxu0 0.0
        %1531 = vmatpush1.xpose.msra.mxu0 0.0
        %1532 = vmatprep.subr.mxu0 0.0
        %1533 = vmatpush1.xpose.msra.mxu0 0.0
        %1534 = vmatprep.subr.mxu0 0.0
        %1535 = vmatpush1.xpose.msra.mxu0 0.0
        %1536 = vmatprep.subr.mxu0 0.0
        %1537 = vmatpush1.xpose.msra.mxu0 0.0
        %1538 = vmatprep.subr.mxu0 0.0
        %1539 = vmatpush1.xpose.msra.mxu0 0.0
        %1540 = vmatprep.subr.mxu0 0.0
        %1541 = vmatpush1.xpose.msra.mxu0 0.0
        %1542 = vmatprep.subr.mxu0 0.0
        %1543 = vmatpush1.xpose.msra.mxu0 0.0
        %1544 = vmatprep.subr.mxu0 0.0
        %1545 = vmatpush1.xpose.msra.mxu0 0.0
        %1546 = vmatprep.subr.mxu0 0.0
        %1547 = vmatpush1.xpose.msra.mxu0 0.0
        %1548 = vmatprep.subr.mxu0 0.0
        %1549 = vmatpush1.xpose.msra.mxu0 0.0
        %1550 = vmatprep.subr.mxu0 0.0
        %1551 = vmatpush1.xpose.msra.mxu0 0.0
        %1552 = vmatprep.subr.mxu0 0.0
        %1553 = vmatpush1.xpose.msra.mxu0 0.0
        %1554 = vmatprep.subr.mxu0 0.0
        %1555 = vmatpush1.xpose.msra.mxu0 0.0
        %1556 = vmatprep.subr.mxu0 0.0
        %1557 = vmatpush1.xpose.msra.mxu0 0.0
        %1558 = vmatprep.subr.mxu0 0.0
        %1559 = vmatpush1.xpose.msra.mxu0 0.0
        %1560 = vmatprep.subr.mxu0 0.0
        %1561 = vmatpush1.xpose.msra.mxu0 0.0
        %1562 = vmatprep.subr.mxu0 0.0
        %1563 = vmatpush1.xpose.msra.mxu0 0.0
        %1564 = vmatprep.subr.mxu0 0.0
        %1565 = vmatpush1.xpose.msra.mxu0 0.0
        %1566 = vmatprep.subr.mxu0 0.0
        %1567 = vmatpush1.xpose.msra.mxu0 0.0
        %1568 = vmatprep.subr.mxu0 0.0
        %1569 = vmatpush1.xpose.msra.mxu0 0.0
        %1570 = vmatprep.subr.mxu0 0.0
        %1571 = vmatpush1.xpose.msra.mxu0 0.0
        %1572 = vmatprep.subr.mxu0 0.0
        %1573 = vmatpush1.xpose.msra.mxu0 0.0
        %1574 = vmatprep.subr.mxu0 0.0
        %1575 = vmatpush1.xpose.msra.mxu0 0.0
        %1576 = vmatprep.subr.mxu0 0.0
        %1577 = vmatpush1.xpose.msra.mxu0 0.0
        %1578 = vmatprep.subr.mxu0 0.0
        %1579 = vmatpush1.xpose.msra.mxu0 0.0
        %1580 = vmatprep.subr.mxu0 0.0
        %1581 = vmatpush1.xpose.msra.mxu0 0.0
        %1582 = vmatprep.subr.mxu0 0.0
        %1583 = vmatpush1.xpose.msra.mxu0 0.0
        %1584 = vmatprep.subr.mxu0 0.0
        %1585 = vmatpush1.xpose.msra.mxu0 0.0
        %1586 = vmatprep.subr.mxu0 0.0
        %1587 = vmatpush1.xpose.msra.mxu0 0.0
        %1588 = vmatprep.subr.mxu0 0.0
        %1589 = vmatpush1.xpose.msra.mxu0 0.0
        %1590 = vmatprep.subr.mxu0 0.0
        %1591 = vmatpush1.xpose.msra.mxu0 0.0
        %1592 = vmatprep.mubr.f32.mxu0 0.0
        %1593 = vmatmul.mubr.f32.gmra.mrb[0].mxu0 %v1523
        %v1594 = vpop.f32.mrb[0].mxu0
        %v1595 = vadd.f32 0.0, %v1594
        %v1596 = vpop.f32.mrb[0].mxu0
        %1597 = vdwg.mxu0
        %v1599 = vsel %vm905, %v1354, 0
        %v1602 = vsel %vm905, %v1237, 0
        %1604 = vmatprep.subr.mxu0 0.0
        %1605 = vmatpush1.xpose.msra.mxu0 %v1602
        %1606 = vmatprep.subr.mxu0 0.0
        %1607 = vmatpush1.xpose.msra.mxu0 0.0
        %1608 = vmatprep.subr.mxu0 0.0
        %1609 = vmatpush1.xpose.msra.mxu0 0.0
        %1610 = vmatprep.subr.mxu0 0.0
        %1611 = vmatpush1.xpose.msra.mxu0 0.0
        %1612 = vmatprep.subr.mxu0 0.0
        %1613 = vmatpush1.xpose.msra.mxu0 0.0
        %1614 = vmatprep.subr.mxu0 0.0
        %1615 = vmatpush1.xpose.msra.mxu0 0.0
        %1616 = vmatprep.subr.mxu0 0.0
        %1617 = vmatpush1.xpose.msra.mxu0 0.0
        %1618 = vmatprep.subr.mxu0 0.0
        %1619 = vmatpush1.xpose.msra.mxu0 0.0
        %1620 = vmatprep.subr.mxu0 0.0
        %1621 = vmatpush1.xpose.msra.mxu0 0.0
        %1622 = vmatprep.subr.mxu0 0.0
        %1623 = vmatpush1.xpose.msra.mxu0 0.0
        %1624 = vmatprep.subr.mxu0 0.0
        %1625 = vmatpush1.xpose.msra.mxu0 0.0
        %1626 = vmatprep.subr.mxu0 0.0
        %1627 = vmatpush1.xpose.msra.mxu0 0.0
        %1628 = vmatprep.subr.mxu0 0.0
        %1629 = vmatpush1.xpose.msra.mxu0 0.0
        %1630 = vmatprep.subr.mxu0 0.0
        %1631 = vmatpush1.xpose.msra.mxu0 0.0
        %1632 = vmatprep.subr.mxu0 0.0
        %1633 = vmatpush1.xpose.msra.mxu0 0.0
        %1634 = vmatprep.subr.mxu0 0.0
        %1635 = vmatpush1.xpose.msra.mxu0 0.0
        %1636 = vmatprep.subr.mxu0 0.0
        %1637 = vmatpush1.xpose.msra.mxu0 0.0
        %1638 = vmatprep.subr.mxu0 0.0
        %1639 = vmatpush1.xpose.msra.mxu0 0.0
        %1640 = vmatprep.subr.mxu0 0.0
        %1641 = vmatpush1.xpose.msra.mxu0 0.0
        %1642 = vmatprep.subr.mxu0 0.0
        %1643 = vmatpush1.xpose.msra.mxu0 0.0
        %1644 = vmatprep.subr.mxu0 0.0
        %1645 = vmatpush1.xpose.msra.mxu0 0.0
        %1646 = vmatprep.subr.mxu0 0.0
        %1647 = vmatpush1.xpose.msra.mxu0 0.0
        %1648 = vmatprep.subr.mxu0 0.0
        %1649 = vmatpush1.xpose.msra.mxu0 0.0
        %1650 = vmatprep.subr.mxu0 0.0
        %1651 = vmatpush1.xpose.msra.mxu0 0.0
        %1652 = vmatprep.subr.mxu0 0.0
        %1653 = vmatpush1.xpose.msra.mxu0 0.0
        %1654 = vmatprep.subr.mxu0 0.0
        %1655 = vmatpush1.xpose.msra.mxu0 0.0
        %1656 = vmatprep.subr.mxu0 0.0
        %1657 = vmatpush1.xpose.msra.mxu0 0.0
        %1658 = vmatprep.subr.mxu0 0.0
        %1659 = vmatpush1.xpose.msra.mxu0 0.0
        %1660 = vmatprep.subr.mxu0 0.0
        %1661 = vmatpush1.xpose.msra.mxu0 0.0
        %1662 = vmatprep.subr.mxu0 0.0
        %1663 = vmatpush1.xpose.msra.mxu0 0.0
        %1664 = vmatprep.subr.mxu0 0.0
        %1665 = vmatpush1.xpose.msra.mxu0 0.0
        %1666 = vmatprep.subr.mxu0 0.0
        %1667 = vmatpush1.xpose.msra.mxu0 0.0
        %1668 = vmatprep.mubr.f32.mxu0 0.0
        %1669 = vmatmul.mubr.f32.gmra.mrb[0].mxu0 %v1599
        %v1670 = vpop.f32.mrb[0].mxu0
        %v1671 = vadd.f32 0.0, %v1670
        %v1672 = vpop.f32.mrb[0].mxu0
        %1673 = vdwg.mxu0
        %1674 = vxpose.xlu0.b32.start [1/16] %v1443, 128
        %1675 = vxpose.xlu0.b32.cont [2/16] 0.0, 128
        %1676 = vxpose.xlu0.b32.cont [3/16] 0.0, 128
        %1677 = vxpose.xlu0.b32.cont [4/16] 0.0, 128
        %1678 = vxpose.xlu0.b32.cont [5/16] 0.0, 128
        %1679 = vxpose.xlu0.b32.cont [6/16] 0.0, 128
        %1680 = vxpose.xlu0.b32.cont [7/16] 0.0, 128
        %1681 = vxpose.xlu0.b32.cont [8/16] 0.0, 128
        %1682 = vxpose.xlu0.b32.cont [9/16] 0.0, 128
        %1683 = vxpose.xlu0.b32.cont [10/16] 0.0, 128
        %1684 = vxpose.xlu0.b32.cont [11/16] 0.0, 128
        %1685 = vxpose.xlu0.b32.cont [12/16] 0.0, 128
        %1686 = vxpose.xlu0.b32.cont [13/16] 0.0, 128
        %1687 = vxpose.xlu0.b32.cont [14/16] 0.0, 128
        %1688 = vxpose.xlu0.b32.cont [15/16] 0.0, 128
        %1689 = vxpose.xlu0.b32.end [16/16] 0.0, 128
        %v1690 = vpop.trf.xlu0
        %v1691 = vpop.trf.xlu0
        %v1692 = vpop.trf.xlu0
        %v1693 = vpop.trf.xlu0
        %v1694 = vpop.trf.xlu0
        %v1695 = vpop.trf.xlu0
        %v1696 = vpop.trf.xlu0
        %v1697 = vpop.trf.xlu0
        %v1698 = vpop.trf.xlu0
        %v1699 = vpop.trf.xlu0
        %v1700 = vpop.trf.xlu0
        %v1701 = vpop.trf.xlu0
        %v1702 = vpop.trf.xlu0
        %v1703 = vpop.trf.xlu0
        %v1704 = vpop.trf.xlu0
        %v1705 = vpop.trf.xlu0
        %1706 = vxpose.xlu0.b32.start [1/16] %v1519, 128
        %1707 = vxpose.xlu0.b32.cont [2/16] 0.0, 128
        %1708 = vxpose.xlu0.b32.cont [3/16] 0.0, 128
        %1709 = vxpose.xlu0.b32.cont [4/16] 0.0, 128
        %1710 = vxpose.xlu0.b32.cont [5/16] 0.0, 128
        %1711 = vxpose.xlu0.b32.cont [6/16] 0.0, 128
        %1712 = vxpose.xlu0.b32.cont [7/16] 0.0, 128
        %1713 = vxpose.xlu0.b32.cont [8/16] 0.0, 128
        %1714 = vxpose.xlu0.b32.cont [9/16] 0.0, 128
        %1715 = vxpose.xlu0.b32.cont [10/16] 0.0, 128
        %1716 = vxpose.xlu0.b32.cont [11/16] 0.0, 128
        %1717 = vxpose.xlu0.b32.cont [12/16] 0.0, 128
        %1718 = vxpose.xlu0.b32.cont [13/16] 0.0, 128
        %1719 = vxpose.xlu0.b32.cont [14/16] 0.0, 128
        %1720 = vxpose.xlu0.b32.cont [15/16] 0.0, 128
        %1721 = vxpose.xlu0.b32.end [16/16] 0.0, 128
        %v1722 = vpop.trf.xlu0
        %v1723 = vpop.trf.xlu0
        %v1724 = vpop.trf.xlu0
        %v1725 = vpop.trf.xlu0
        %v1726 = vpop.trf.xlu0
        %v1727 = vpop.trf.xlu0
        %v1728 = vpop.trf.xlu0
        %v1729 = vpop.trf.xlu0
        %v1730 = vpop.trf.xlu0
        %v1731 = vpop.trf.xlu0
        %v1732 = vpop.trf.xlu0
        %v1733 = vpop.trf.xlu0
        %v1734 = vpop.trf.xlu0
        %v1735 = vpop.trf.xlu0
        %v1736 = vpop.trf.xlu0
        %v1737 = vpop.trf.xlu0
        %1738 = vxpose.xlu0.b32.start [1/16] %v1595, 128
        %1739 = vxpose.xlu0.b32.cont [2/16] 0.0, 128
        %1740 = vxpose.xlu0.b32.cont [3/16] 0.0, 128
        %1741 = vxpose.xlu0.b32.cont [4/16] 0.0, 128
        %1742 = vxpose.xlu0.b32.cont [5/16] 0.0, 128
        %1743 = vxpose.xlu0.b32.cont [6/16] 0.0, 128
        %1744 = vxpose.xlu0.b32.cont [7/16] 0.0, 128
        %1745 = vxpose.xlu0.b32.cont [8/16] 0.0, 128
        %1746 = vxpose.xlu0.b32.cont [9/16] 0.0, 128
        %1747 = vxpose.xlu0.b32.cont [10/16] 0.0, 128
        %1748 = vxpose.xlu0.b32.cont [11/16] 0.0, 128
        %1749 = vxpose.xlu0.b32.cont [12/16] 0.0, 128
        %1750 = vxpose.xlu0.b32.cont [13/16] 0.0, 128
        %1751 = vxpose.xlu0.b32.cont [14/16] 0.0, 128
        %1752 = vxpose.xlu0.b32.cont [15/16] 0.0, 128
        %1753 = vxpose.xlu0.b32.end [16/16] 0.0, 128
        %v1754 = vpop.trf.xlu0
        %v1755 = vpop.trf.xlu0
        %v1756 = vpop.trf.xlu0
        %v1757 = vpop.trf.xlu0
        %v1758 = vpop.trf.xlu0
        %v1759 = vpop.trf.xlu0
        %v1760 = vpop.trf.xlu0
        %v1761 = vpop.trf.xlu0
        %v1762 = vpop.trf.xlu0
        %v1763 = vpop.trf.xlu0
        %v1764 = vpop.trf.xlu0
        %v1765 = vpop.trf.xlu0
        %v1766 = vpop.trf.xlu0
        %v1767 = vpop.trf.xlu0
        %v1768 = vpop.trf.xlu0
        %v1769 = vpop.trf.xlu0
        %1770 = vxpose.xlu0.b32.start [1/16] %v1671, 128
        %1771 = vxpose.xlu0.b32.cont [2/16] 0.0, 128
        %1772 = vxpose.xlu0.b32.cont [3/16] 0.0, 128
        %1773 = vxpose.xlu0.b32.cont [4/16] 0.0, 128
        %1774 = vxpose.xlu0.b32.cont [5/16] 0.0, 128
        %1775 = vxpose.xlu0.b32.cont [6/16] 0.0, 128
        %1776 = vxpose.xlu0.b32.cont [7/16] 0.0, 128
        %1777 = vxpose.xlu0.b32.cont [8/16] 0.0, 128
        %1778 = vxpose.xlu0.b32.cont [9/16] 0.0, 128
        %1779 = vxpose.xlu0.b32.cont [10/16] 0.0, 128
        %1780 = vxpose.xlu0.b32.cont [11/16] 0.0, 128
        %1781 = vxpose.xlu0.b32.cont [12/16] 0.0, 128
        %1782 = vxpose.xlu0.b32.cont [13/16] 0.0, 128
        %1783 = vxpose.xlu0.b32.cont [14/16] 0.0, 128
        %1784 = vxpose.xlu0.b32.cont [15/16] 0.0, 128
        %1785 = vxpose.xlu0.b32.end [16/16] 0.0, 128
        %v1786 = vpop.trf.xlu0
        %v1787 = vpop.trf.xlu0
        %v1788 = vpop.trf.xlu0
        %v1789 = vpop.trf.xlu0
        %v1790 = vpop.trf.xlu0
        %v1791 = vpop.trf.xlu0
        %v1792 = vpop.trf.xlu0
        %v1793 = vpop.trf.xlu0
        %v1794 = vpop.trf.xlu0
        %v1795 = vpop.trf.xlu0
        %v1796 = vpop.trf.xlu0
        %v1797 = vpop.trf.xlu0
        %v1798 = vpop.trf.xlu0
        %v1799 = vpop.trf.xlu0
        %v1800 = vpop.trf.xlu0
        %v1801 = vpop.trf.xlu0
        %v1802 = vcombine.low %v1690, %v1754
        %v1803 = vcombine.high %v1690, %v1754
        %v1805 = vunpack.c.l.s4 1983009808
        %v1806 = vunpack.c.0.s8 %v1805
        %v1807 = vlaneseq
        %v1808 = vshrl.u32 %v1807, 7
        %v1809 = vsub.s32 %v1806, %v1808
        %v1810 = vrot.slane %v1802, %v1809
        %v1812 = vunpack.c.l.s4 1983009808
        %v1813 = vunpack.c.0.s8 %v1812
        %v1814 = vlaneseq
        %v1815 = vshrl.u32 %v1814, 7
        %v1816 = vsub.s32 %v1813, %v1815
        %v1817 = vrot.slane %v1803, %v1816
        %v1818 = vcombine.low %v1722, %v1786
        %v1819 = vcombine.high %v1722, %v1786
        %v1821 = vunpack.c.l.s4 1983009808
        %v1822 = vunpack.c.0.s8 %v1821
        %v1823 = vlaneseq
        %v1824 = vshrl.u32 %v1823, 7
        %v1825 = vsub.s32 %v1822, %v1824
        %v1826 = vrot.slane %v1818, %v1825
        %v1828 = vunpack.c.l.s4 1983009808
        %v1829 = vunpack.c.0.s8 %v1828
        %v1830 = vlaneseq
        %v1831 = vshrl.u32 %v1830, 7
        %v1832 = vsub.s32 %v1829, %v1831
        %v1833 = vrot.slane %v1819, %v1832
        %v1834 = vcombine.low %v1810, %v1826
        %v1835 = vcombine.high %v1810, %v1826
        %v1837 = vunpack.c.l.s4 1934713408
        %v1838 = vunpack.c.0.s8 %v1837
        %v1839 = vlaneseq
        %v1840 = vshrl.u32 %v1839, 7
        %v1841 = vsub.s32 %v1838, %v1840
        %v1842 = vrot.slane %v1834, %v1841
        %v1844 = vunpack.c.l.s4 1934713408
        %v1845 = vunpack.c.0.s8 %v1844
        %v1846 = vlaneseq
        %v1847 = vshrl.u32 %v1846, 7
        %v1848 = vsub.s32 %v1845, %v1847
        %v1849 = vrot.slane %v1835, %v1848
        %v1850 = vcombine.low %v1817, %v1833
        %v1851 = vcombine.high %v1817, %v1833
        %v1853 = vunpack.c.l.s4 1934713408
        %v1854 = vunpack.c.0.s8 %v1853
        %v1855 = vlaneseq
        %v1856 = vshrl.u32 %v1855, 7
        %v1857 = vsub.s32 %v1854, %v1856
        %v1858 = vrot.slane %v1850, %v1857
        %v1860 = vunpack.c.l.s4 1934713408
        %v1861 = vunpack.c.0.s8 %v1860
        %v1862 = vlaneseq
        %v1863 = vshrl.u32 %v1862, 7
        %v1864 = vsub.s32 %v1861, %v1863
        %v1865 = vrot.slane %v1851, %v1864
        %v1866 = vcombine.high %v1842, 0.0
        %v1867 = vcombine.high %v1849, 0.0
        %v1868 = vcombine.high %v1858, 0.0
        %v1869 = vcombine.high %v1865, 0.0
        %v1870 = vcombine.low %v1842, %v1849
        %v1872 = vunpack.c.l.s4 1983009808
        %v1873 = vunpack.c.0.s8 %v1872
        %v1874 = vlaneseq
        %v1875 = vshrl.u32 %v1874, 7
        %v1876 = vsub.s32 %v1873, %v1875
        %v1877 = vrot.slane %v1870, %v1876
        %v1878 = vcombine.low %v1866, %v1867
        %v1880 = vunpack.c.l.s4 1983009808
        %v1881 = vunpack.c.0.s8 %v1880
        %v1882 = vlaneseq
        %v1883 = vshrl.u32 %v1882, 7
        %v1884 = vsub.s32 %v1881, %v1883
        %v1885 = vrot.slane %v1878, %v1884
        %v1886 = vcombine.low %v1858, %v1865
        %v1888 = vunpack.c.l.s4 1983009808
        %v1889 = vunpack.c.0.s8 %v1888
        %v1890 = vlaneseq
        %v1891 = vshrl.u32 %v1890, 7
        %v1892 = vsub.s32 %v1889, %v1891
        %v1893 = vrot.slane %v1886, %v1892
        %v1894 = vcombine.low %v1868, %v1869
        %v1896 = vunpack.c.l.s4 1983009808
        %v1897 = vunpack.c.0.s8 %v1896
        %v1898 = vlaneseq
        %v1899 = vshrl.u32 %v1898, 7
        %v1900 = vsub.s32 %v1897, %v1899
        %v1901 = vrot.slane %v1894, %v1900
        %v1902 = vcombine.low %v1877, %v1885
        %v1903 = vcombine.high %v1877, %v1885
        %v1905 = vunpack.c.l.s4 1934713408
        %v1906 = vunpack.c.0.s8 %v1905
        %v1907 = vlaneseq
        %v1908 = vshrl.u32 %v1907, 7
        %v1909 = vsub.s32 %v1906, %v1908
        %v1910 = vrot.slane %v1902, %v1909
        %v1912 = vunpack.c.l.s4 1934713408
        %v1913 = vunpack.c.0.s8 %v1912
        %v1914 = vlaneseq
        %v1915 = vshrl.u32 %v1914, 7
        %v1916 = vsub.s32 %v1913, %v1915
        %v1917 = vrot.slane %v1903, %v1916
        %v1918 = vcombine.low %v1893, %v1901
        %v1919 = vcombine.high %v1893, %v1901
        %v1921 = vunpack.c.l.s4 1934713408
        %v1922 = vunpack.c.0.s8 %v1921
        %v1923 = vlaneseq
        %v1924 = vshrl.u32 %v1923, 7
        %v1925 = vsub.s32 %v1922, %v1924
        %v1926 = vrot.slane %v1918, %v1925
        %v1928 = vunpack.c.l.s4 1934713408
        %v1929 = vunpack.c.0.s8 %v1928
        %v1930 = vlaneseq
        %v1931 = vshrl.u32 %v1930, 7
        %v1932 = vsub.s32 %v1929, %v1931
        %v1933 = vrot.slane %v1919, %v1932
        %v1934 = vcombine.low %v1910, %v1926
        %v1935 = vcombine.high %v1910, %v1926
        %v1936 = vcombine.low %v1917, %v1933
        %v1937 = vcombine.high %v1917, %v1933
        %1939 = vrot.lane.b32.xlu0 %v1935, 8
        %v1940 = vpop.permute.xlu0 %1939
        %1943 = vrot.lane.b32.xlu0 %v1936, 16
        %v1944 = vpop.permute.xlu0 %1943
        %1947 = vrot.lane.b32.xlu0 %v1937, 24
        %v1948 = vpop.permute.xlu0 %1947
        %v1950 = vsel %vm905, %v1934, %v1940
        %vm1951 = vcmask 130048
        %v1952 = vsel %vm1951, %v1950, %v1944
        %vm1953 = vcmask 195584
        %v1954 = vsel %vm1953, %v1952, %v1948
        %v1955 = vld [vmem:[#allocation13] sm:$0xff]
        %v1956 = vld [vmem:[#allocation13 + $0x8] sm:$0xff]
        %v1957 = vld [vmem:[#allocation13 + $0x10] sm:$0xff]
        %v1958 = vld [vmem:[#allocation13 + $0x18] sm:$0xff]
        %v1960 = vsel %vm522, %v1954, 0
        %1962 = vmatprep.subr.mxu0 0.0
        %1963 = vmatpush1.msra.mxu0 %v1955
        %1964 = vmatprep.subr.mxu0 0.0
        %1965 = vmatpush1.msra.mxu0 %v1956
        %1966 = vmatprep.subr.mxu0 0.0
        %1967 = vmatpush1.msra.mxu0 %v1957
        %1968 = vmatprep.subr.mxu0 0.0
        %1969 = vmatpush1.msra.mxu0 %v1958
        %1970 = vmatprep.subr.mxu0 0.0
        %1971 = vmatpush1.msra.mxu0 0.0
        %1972 = vmatprep.subr.mxu0 0.0
        %1973 = vmatpush1.msra.mxu0 0.0
        %1974 = vmatprep.subr.mxu0 0.0
        %1975 = vmatpush1.msra.mxu0 0.0
        %1976 = vmatprep.subr.mxu0 0.0
        %1977 = vmatpush1.msra.mxu0 0.0
        %1978 = vmatprep.subr.mxu0 0.0
        %1979 = vmatpush1.msra.mxu0 0.0
        %1980 = vmatprep.subr.mxu0 0.0
        %1981 = vmatpush1.msra.mxu0 0.0
        %1982 = vmatprep.subr.mxu0 0.0
        %1983 = vmatpush1.msra.mxu0 0.0
        %1984 = vmatprep.subr.mxu0 0.0
        %1985 = vmatpush1.msra.mxu0 0.0
        %1986 = vmatprep.subr.mxu0 0.0
        %1987 = vmatpush1.msra.mxu0 0.0
        %1988 = vmatprep.subr.mxu0 0.0
        %1989 = vmatpush1.msra.mxu0 0.0
        %1990 = vmatprep.subr.mxu0 0.0
        %1991 = vmatpush1.msra.mxu0 0.0
        %1992 = vmatprep.subr.mxu0 0.0
        %1993 = vmatpush1.msra.mxu0 0.0
        %1994 = vmatprep.subr.mxu0 0.0
        %1995 = vmatpush1.msra.mxu0 0.0
        %1996 = vmatprep.subr.mxu0 0.0
        %1997 = vmatpush1.msra.mxu0 0.0
        %1998 = vmatprep.subr.mxu0 0.0
        %1999 = vmatpush1.msra.mxu0 0.0
        %2000 = vmatprep.subr.mxu0 0.0
        %2001 = vmatpush1.msra.mxu0 0.0
        %2002 = vmatprep.subr.mxu0 0.0
        %2003 = vmatpush1.msra.mxu0 0.0
        %2004 = vmatprep.subr.mxu0 0.0
        %2005 = vmatpush1.msra.mxu0 0.0
        %2006 = vmatprep.subr.mxu0 0.0
        %2007 = vmatpush1.msra.mxu0 0.0
        %2008 = vmatprep.subr.mxu0 0.0
        %2009 = vmatpush1.msra.mxu0 0.0
        %2010 = vmatprep.subr.mxu0 0.0
        %2011 = vmatpush1.msra.mxu0 0.0
        %2012 = vmatprep.subr.mxu0 0.0
        %2013 = vmatpush1.msra.mxu0 0.0
        %2014 = vmatprep.subr.mxu0 0.0
        %2015 = vmatpush1.msra.mxu0 0.0
        %2016 = vmatprep.subr.mxu0 0.0
        %2017 = vmatpush1.msra.mxu0 0.0
        %2018 = vmatprep.subr.mxu0 0.0
        %2019 = vmatpush1.msra.mxu0 0.0
        %2020 = vmatprep.subr.mxu0 0.0
        %2021 = vmatpush1.msra.mxu0 0.0
        %2022 = vmatprep.subr.mxu0 0.0
        %2023 = vmatpush1.msra.mxu0 0.0
        %2024 = vmatprep.subr.mxu0 0.0
        %2025 = vmatpush1.msra.mxu0 0.0
        %2026 = vmatprep.mubr.f32.mxu0 0.0
        %2027 = vmatmul.mubr.f32.gmra.mrb[0].mxu0 %v1960
        %v2028 = vpop.f32.mrb[0].mxu0
        %v2029 = vadd.f32 %v515, %v2028
        %v2030 = vpop.f32.mrb[0].mxu0
        %2031 = vdwg.mxu0
        %v2032 = vsel %vm522, %v2029, 0.0
        %2033 = vadd.xlane.f32.xlu0 %v2032
        %v2034 = vpop.xlane.xlu0 %2033
        %v2035 = vrcp.pop 32.0
        %v2036 = vmul.f32 %v2034, %v2035
        %v2037 = vsub.f32 %v2029, %v2036
        %v2038 = vmul.f32 %v2037, %v2037
        %v2039 = vsel %vm522, %v2038, 0.0
        %2040 = vadd.xlane.f32.xlu0 %v2039
        %v2041 = vpop.xlane.xlu0 %2040
        %v2042 = vmul.f32 %v2041, %v2035
        %v2043 = vadd.f32 %v2042, 1e-06
        %v2044 = vrsqrt.pop %v2043
        %v2045 = vmul.f32 %v2037, %v2044
        %v2046 = vld [vmem:[%s7] sm:$0x1]
        %v2048 = vlaneseq
        %v2049 = vshrl.u32 %v2048, 7
        %v2050 = vsub.s32 0, %v2049
        %v2051 = vrot.slane %v2046, %v2050
        %v2053 = vmul.f32 %v2045, %v2051
        %v2054 = vld [vmem:[%s8] sm:$0x1]
        %v2056 = vlaneseq
        %v2057 = vshrl.u32 %v2056, 7
        %v2058 = vsub.s32 0, %v2057
        %v2059 = vrot.slane %v2054, %v2058
        %v2061 = vadd.f32 %v2053, %v2059
        %2062 = vst.msk [vmem:[%s507] sm:$0xff] %vm522, %v2061
        %s2063 = sand.u32 %s248, 1
        %s2064 = scalar_lea.sflag [#allocation4], %s2063
        %s2065 = sand.u32 %s248, 1
        %s2066 = smul.addr %s2065, 8
        %s2067 = scalar_lea.vmem [#allocation14], %s2066
        %s2068 = sand.u32 %s274, 1
        %s2069 = scalar_lea.sflag [#allocation16], %s2068
        %s2070 = sand.u32 %s274, 1
        %s2071 = smul.addr %s2070, 32
        %s2072 = scalar_lea.vmem [#allocation15], %s2071
        // Predicated region
        $region85: #{tpu_custom_call.1} parent=55 // pred_check
          %p2073 = pneg %p258
        $region86: #{tpu_custom_call.1} parent=55 // pred_check_branch
          %2075 = sbr.rel (%p2073) target = $region88
        $region87: #{tpu_custom_call.1} parent=55 // pred_region
          %s2077 = ssub.s32 128, 128
          %2078 = vsyncadd %s2064, %s2077
          %s2079 = smul.addr %s36, 128
          %s2080 = scalar_lea.hbm %s9, %s2079
          %s2082 = sshll.u32 %s2067, 4
          %s2083 = int_to_ptr.vmem [resolvable:$true] %s2082
          %2085 = dma.vmem_to_hbm [thread:$0]  %s2083, 128, %s2080, %s2064
        $region88: #{tpu_custom_call.1} parent=55 // pred_fallthru
          _
        // Predicated region
        $region89: #{tpu_custom_call.1} parent=55 // pred_check
          %p2086 = pneg %p284
        $region90: #{tpu_custom_call.1} parent=55 // pred_check_branch
          %2088 = sbr.rel (%p2086) target = $region92
        $region91: #{tpu_custom_call.1} parent=55 // pred_region
          %s2090 = ssub.s32 512, 512
          %2091 = vsyncadd %s2069, %s2090
          %s2092 = smul.addr %s36, 4
          %s2093 = smul.addr %s2092, 128
          %s2094 = scalar_lea.hbm %s10, %s2093
          %s2095 = sshll.u32 %s2072, 4
          %s2096 = int_to_ptr.vmem [resolvable:$true] %s2095
          %2101 = dma.vmem_to_hbm [thread:$0]  %s2096, 512, %s2094, %s2069, 128, 128, 8
        $region92: #{tpu_custom_call.1} parent=55 // pred_fallthru
          _
      $region56: #{tpu_custom_call.1} parent=5 // pred_fallthru
        _
      %p2102 = scmp.le.s32.totalorder 2, %s31
      // Predicated region
      $region93: #{tpu_custom_call.1} parent=5 // pred_check
        %p2103 = pneg %p2102
      $region94: #{tpu_custom_call.1} parent=5 // pred_check_branch
        %2105 = sbr.rel (%p2103) target = $region96
      $region95: #{tpu_custom_call.1} parent=5 // pred_region
        %s2106 = ssub.s32 %s31, 2
        // Predicated region
        $region97: #{tpu_custom_call.1} parent=95 // pred_check
          %p2107 = pneg %p264
        $region98: #{tpu_custom_call.1} parent=95 // pred_check_branch
          %2109 = sbr.rel (%p2107) target = $region100
        $region99: #{tpu_custom_call.1} parent=95 // pred_region
          %s2110 = sand.u32 %s249, 1
          %s2111 = scalar_lea.sflag [#allocation4], %s2110
          %s2112 = sand.u32 %s249, 1
          %s2113 = smul.addr %s2112, 8
          %s2114 = scalar_lea.vmem [#allocation14], %s2113
          %2115 = dma.done %s2111, 128
        $region100: #{tpu_custom_call.1} parent=95 // pred_fallthru
          _
        // Predicated region
        $region101: #{tpu_custom_call.1} parent=95 // pred_check
          %p2116 = pneg %p290
        $region102: #{tpu_custom_call.1} parent=95 // pred_check_branch
          %2118 = sbr.rel (%p2116) target = $region104
        $region103: #{tpu_custom_call.1} parent=95 // pred_region
          %s2119 = sand.u32 %s275, 1
          %s2120 = scalar_lea.sflag [#allocation16], %s2119
          %s2121 = sand.u32 %s275, 1
          %s2122 = smul.addr %s2121, 32
          %s2123 = scalar_lea.vmem [#allocation15], %s2122
          %2124 = dma.done %s2120, 512
        $region104: #{tpu_custom_call.1} parent=95 // pred_fallthru
          _
      $region96: #{tpu_custom_call.1} parent=5 // pred_fallthru
        _
    $region6: #{tpu_custom_call.1} parent=1 // loop_footer
      %s35 = sadd.s32 1, %s31
    $region7: #{tpu_custom_call.1} parent=1 // loop_footer_branch
      %30 = sbr.rel target = $region3
    $region8: #{tpu_custom_call.1} parent=1 // loop_exit
      _
    %2125 = vsyncpa [#allocation3], 1
    %s2126 = scalar_lea.sflag [#allocation3], 1
    %2127 = vsyncpa %s2126, 1
    %2128 = vsyncpa [#allocation6], 1
    %s2129 = scalar_lea.sflag [#allocation6], 1
    %2130 = vsyncpa %s2129, 1
    %2131 = vsyncpa [#allocation9], 1
    %2132 = vsyncpa [#allocation12], 1
    %2133 = vsyncpa [#allocation4], 1
    %s2134 = scalar_lea.sflag [#allocation4], 1
    %2135 = vsyncpa %s2134, 1
    %2136 = vsyncpa [#allocation16], 1
    %s2137 = scalar_lea.sflag [#allocation16], 1
    %2138 = vsyncpa %s2137, 1

</llo_original>
